<compile_context>
chip_gen: v5e
topology: v5e:2x2
jax: 0.10.0
libtpu: 0.0.40
codegen_flags: <defaults>
</compile_context>

<pallas_src>
import functools

import jax
import jax.numpy as jnp
from jax.experimental import pallas as pl
from jax.experimental.pallas import tpu as pltpu

_BN_EPS = 1e-5


def _round_up(x, m):
    return (x + m - 1) // m * m


def _pick_tile(m, target):
    """Largest tile <= target (rounded to 8) that keeps padding waste small."""
    if m <= target:
        return _round_up(max(m, 1), 8)
    n_tiles = -(-m // target)
    return _round_up(-(-m // n_tiles), 8)


# --------------------------------------------------------------------------- conv kernel
def _conv_kernel(*refs, n_k, act, has_bias, want_stats, apply_tanh):
    """Fused im2col-matmul: [pre-act] -> bf16 matmul (f32 acc) -> [+bias] -> [stats] -> [tanh]."""
    idx = 2
    p_ref, w_ref = refs[0], refs[1]
    b_ref = None
    if has_bias:
        b_ref = refs[idx]
        idx += 1
    o_ref = refs[idx]
    idx += 1
    s_ref = None
    if want_stats:
        s_ref = refs[idx]
        idx += 1
    acc_ref = refs[idx]

    k = pl.program_id(1)

    @pl.when(k == 0)
    def _():
        acc_ref[...] = jnp.zeros_like(acc_ref)

    p = p_ref[...]                                  # bf16 patch tile
    if act == "lrelu":                              # pre-activation fused (act(0)=0, so it
        p = jnp.where(p >= 0, p, 0.2 * p)           # commutes with the zero padding)
    elif act == "relu":
        p = jnp.maximum(p, 0)
    acc_ref[...] += jnp.dot(p, w_ref[...], preferred_element_type=jnp.float32)

    @pl.when(k == n_k - 1)
    def _():
        y = acc_ref[...]
        if has_bias:
            y = y + b_ref[...]
        if want_stats:
            s0 = jnp.sum(y, axis=0, keepdims=True)
            s1 = jnp.sum(y * y, axis=0, keepdims=True)
            zero = jnp.zeros_like(s0)
            s_ref[...] = jnp.concatenate([s0, s1, zero, zero, zero, zero, zero, zero],
                                         axis=0)[None]
        if apply_tanh:
            y = jnp.tanh(y)
        o_ref[...] = y.astype(o_ref.dtype)


def _conv_matmul(patches, w_flat, bias, *, act, want_stats, apply_tanh,
                 out_dtype=jnp.bfloat16):
    M, K = patches.shape
    Kw, C = w_flat.shape
    assert K == Kw

    Cp = _round_up(C, 128)
    Kp0 = _round_up(K, 128)
    TK = Kp0 if Kp0 <= 512 else 512
    Kp = _round_up(Kp0, TK)
    TM = _pick_tile(M, 512)
    Mp = _round_up(M, TM)
    n_m, n_k = Mp // TM, Kp // TK

    patches_p = jnp.pad(patches.astype(jnp.bfloat16), ((0, Mp - M), (0, Kp - K)))
    w_p = jnp.pad(w_flat.astype(jnp.bfloat16), ((0, Kp - K), (0, Cp - C)))

    in_arrays = [patches_p, w_p]
    in_specs = [pl.BlockSpec((TM, TK), lambda i, k: (i, k)),
                pl.BlockSpec((TK, Cp), lambda i, k: (k, 0))]
    has_bias = bias is not None
    if has_bias:
        b_p = jnp.pad(bias.astype(jnp.float32).reshape(1, C), ((0, 0), (0, Cp - C)))
        in_arrays.append(b_p)
        in_specs.append(pl.BlockSpec((1, Cp), lambda i, k: (0, 0)))

    if want_stats:
        out_shape = (jax.ShapeDtypeStruct((Mp, Cp), out_dtype),
                     jax.ShapeDtypeStruct((n_m, 8, Cp), jnp.float32))
        out_specs = (pl.BlockSpec((TM, Cp), lambda i, k: (i, 0)),
                     pl.BlockSpec((1, 8, Cp), lambda i, k: (i, 0, 0)))
    else:
        out_shape = jax.ShapeDtypeStruct((Mp, Cp), out_dtype)
        out_specs = pl.BlockSpec((TM, Cp), lambda i, k: (i, 0))

    # per-call VMEM footprint (double-buffered bf16 inputs/outputs + f32 accumulator)
    vmem = 2 * (TM * TK + TK * Cp + TM * Cp) * 2 + TM * Cp * 4
    if want_stats:
        vmem += 2 * 8 * Cp * 4
    if has_bias:
        vmem += 2 * Cp * 4
    vmem_limit = int(min(max(2 * vmem + (2 << 20), 8 << 20), 100 << 20))

    kernel = functools.partial(_conv_kernel, n_k=n_k, act=act, has_bias=has_bias,
                               want_stats=want_stats, apply_tanh=apply_tanh)

    res = pl.pallas_call(
        kernel,
        grid=(n_m, n_k),
        in_specs=in_specs,
        out_specs=out_specs,
        out_shape=out_shape,
        scratch_shapes=[pltpu.VMEM((TM, Cp), jnp.float32)],
        compiler_params=pltpu.CompilerParams(
            dimension_semantics=("parallel", "arbitrary"),
            vmem_limit_bytes=vmem_limit),
    )(*in_arrays)

    if want_stats:
        out_p, stats_p = res
        stats = jnp.sum(stats_p, axis=0)[:2, :C]        # (2, C): sum, sumsq over valid rows
    else:
        out_p, stats = res, None
    return out_p[:M, :C], stats


# ---------------------------------------------------------------------- BN affine epilogue
def _bn_kernel(y_ref, ss_ref, o_ref):
    y = y_ref[...].astype(jnp.float32)
    o_ref[...] = (y * ss_ref[0:1, :] + ss_ref[1:2, :]).astype(o_ref.dtype)


def _bn_affine(y_flat, scale, shift, out_dtype=jnp.bfloat16):
    M, C = y_flat.shape
    Cp = _round_up(C, 128)
    TM = _pick_tile(M, 2048)
    Mp = _round_up(M, TM)
    y_p = jnp.pad(y_flat, ((0, Mp - M), (0, Cp - C)))
    ss = jnp.stack([scale, shift]).astype(jnp.float32)          # (2, C)
    ss_p = jnp.pad(ss, ((0, 6), (0, Cp - C)))                    # (8, Cp) slab
    vmem_limit = int(min(max(4 * TM * Cp * 2 + 2 * 8 * Cp * 4 + (2 << 20), 8 << 20),
                         100 << 20))
    out = pl.pallas_call(
        _bn_kernel,
        grid=(Mp // TM,),
        in_specs=[pl.BlockSpec((TM, Cp), lambda i: (i, 0)),
                  pl.BlockSpec((8, Cp), lambda i: (0, 0))],
        out_specs=pl.BlockSpec((TM, Cp), lambda i: (i, 0)),
        out_shape=jax.ShapeDtypeStruct((Mp, Cp), out_dtype),
        compiler_params=pltpu.CompilerParams(
            dimension_semantics=("parallel",),
            vmem_limit_bytes=vmem_limit),
    )(y_p, ss_p)
    return out[:M, :C]


def _bn_scale_shift(stats, count, gamma, beta):
    # train-mode BatchNorm: batch mean / biased variance over N*H*W
    mean = stats[0] / count
    var = jnp.maximum(stats[1] / count - mean * mean, 0.0)
    scale = gamma.astype(jnp.float32) * jax.lax.rsqrt(var + _BN_EPS)
    shift = beta.astype(jnp.float32) - mean * scale
    return scale, shift


# ----------------------------------------------------------------------------------- glue
def _im2col(x, kh, kw, stride):
    N, H, W, C = x.shape
    Ho = (H - kh) // stride + 1
    Wo = (W - kw) // stride + 1
    cols = []
    for i in range(kh):
        for j in range(kw):
            cols.append(x[:, i:i + (Ho - 1) * stride + 1:stride,
                          j:j + (Wo - 1) * stride + 1:stride, :])
    patches = jnp.concatenate(cols, axis=-1)                    # [N, Ho, Wo, kh*kw*C]
    return patches.reshape(N * Ho * Wo, kh * kw * C), (N, Ho, Wo)


def _down_conv(x, w_oihw, *, act, gamma=None, beta=None):
    """Conv2d(k=4, s=2, p=1, bias=False) with fused pre-activation and optional BatchNorm."""
    Cout, Cin, kh, kw = w_oihw.shape
    xp = jnp.pad(x, ((0, 0), (1, 1), (1, 1), (0, 0)))
    patches, (N, Ho, Wo) = _im2col(xp, kh, kw, 2)
    w_flat = jnp.transpose(w_oihw, (2, 3, 1, 0)).reshape(kh * kw * Cin, Cout)
    want_stats = gamma is not None
    y, stats = _conv_matmul(patches, w_flat, None, act=act,
                            want_stats=want_stats, apply_tanh=False)
    if want_stats:
        scale, shift = _bn_scale_shift(stats, N * Ho * Wo, gamma, beta)
        y = _bn_affine(y, scale, shift)
    return y.reshape(N, Ho, Wo, Cout)


def _up_conv(x, w_iohw, *, bias=None, gamma=None, beta=None, apply_tanh=False):
    """ConvTranspose2d(k=4, s=2, p=1) via 4-sub-conv (sub-pixel) decomposition.

    o[2s]   = x[s-1]*w[3] + x[s]*w[1]      (per axis)
    o[2s+1] = x[s]  *w[2] + x[s+1]*w[0]
    Fused pre-ReLU (uprelu), optional bias / tanh in-kernel, optional BatchNorm epilogue.
    """
    N, H, W, Cin = x.shape
    Cout = w_iohw.shape[1]
    assert w_iohw.shape[0] == Cin
    want_stats = gamma is not None
    sel = {0: jnp.array([3, 1]), 1: jnp.array([2, 0])}
    stats_total = None
    di_rows = []
    for di in (0, 1):
        dj_outs = []
        for dj in (0, 1):
            ph = (1, 0) if di == 0 else (0, 1)
            pw = (1, 0) if dj == 0 else (0, 1)
            xp = jnp.pad(x, ((0, 0), ph, pw, (0, 0)))
            wsub = w_iohw[:, :, sel[di], :][:, :, :, sel[dj]]        # (Cin, Cout, 2, 2)
            w_flat = jnp.transpose(wsub, (2, 3, 0, 1)).reshape(4 * Cin, Cout)
            patches, _ = _im2col(xp, 2, 2, 1)
            y, stats = _conv_matmul(patches, w_flat, bias, act="relu",
                                    want_stats=want_stats, apply_tanh=apply_tanh)
            dj_outs.append(y.reshape(N, H, W, Cout))
            if want_stats:
                stats_total = stats if stats_total is None else stats_total + stats
        di_rows.append(jnp.stack(dj_outs, axis=3))                    # (N,H,W,2[dj],Cout)
    ys = jnp.stack(di_rows, axis=3)                                   # (N,H,W,2[di],2[dj],C)
    y = jnp.transpose(ys, (0, 1, 3, 2, 4, 5)).reshape(N, 2 * H, 2 * W, Cout)
    if want_stats:
        scale, shift = _bn_scale_shift(stats_total, N * 4 * H * W, gamma, beta)
        y = _bn_affine(y.reshape(-1, Cout), scale, shift).reshape(N, 2 * H, 2 * W, Cout)
    return y


# --------------------------------------------------------------------------------- params
def init_params(key, input_nc, output_nc, ngf):
    keys = iter(jax.random.split(key, 13))

    def nrm(shape, scale=0.05):
        return scale * jax.random.normal(next(keys), shape, dtype=jnp.float32)

    p = {}
    # outermost down: Conv2d(input_nc, ngf, 4, 2, 1, bias=False) -- no act before, no norm
    p["down0_w"] = nrm((ngf, input_nc, 4, 4))
    # middle down: LeakyReLU -> Conv2d(ngf, ngf*2) -> BN
    p["down1_w"] = nrm((ngf * 2, ngf, 4, 4))
    p["down1_g"] = 1.0 + nrm((ngf * 2,))
    p["down1_b"] = nrm((ngf * 2,))
    # innermost down: LeakyReLU -> Conv2d(ngf*2, ngf*4) (no norm)
    p["down2_w"] = nrm((ngf * 4, ngf * 2, 4, 4))
    # innermost up: ReLU -> ConvTranspose2d(ngf*4, ngf*2) -> BN   (weight layout: I,O,kh,kw)
    p["up2_w"] = nrm((ngf * 4, ngf * 2, 4, 4))
    p["up2_g"] = 1.0 + nrm((ngf * 2,))
    p["up2_b"] = nrm((ngf * 2,))
    # middle up: ReLU -> ConvTranspose2d(ngf*4, ngf) -> BN
    p["up1_w"] = nrm((ngf * 4, ngf, 4, 4))
    p["up1_g"] = 1.0 + nrm((ngf,))
    p["up1_b"] = nrm((ngf,))
    # outermost up: ReLU -> ConvTranspose2d(ngf*2, output_nc, bias=True) -> Tanh
    p["up0_w"] = nrm((ngf * 2, output_nc, 4, 4))
    p["up0_bias"] = nrm((output_nc,))
    return p


# -------------------------------------------------------------------------------- forward
def unet_block_forward(params, x_nchw):
    p = params
    x = jnp.transpose(x_nchw, (0, 2, 3, 1)).astype(jnp.bfloat16)     # NCHW -> NHWC, bf16
    # outermost down: conv only
    a = _down_conv(x, p["down0_w"], act=None)
    # middle down: LeakyReLU(0.2) -> conv -> BN
    c = _down_conv(a, p["down1_w"], act="lrelu", gamma=p["down1_g"], beta=p["down1_b"])
    # innermost down: LeakyReLU(0.2) -> conv (no norm)
    f = _down_conv(c, p["down2_w"], act="lrelu")
    # innermost up: ReLU -> convT -> BN ; innermost block returns cat([c, g])
    g = _up_conv(f, p["up2_w"], gamma=p["up2_g"], beta=p["up2_b"])
    d = jnp.concatenate([c, g], axis=-1)
    # middle up: ReLU -> convT -> BN ; middle block returns cat([a, e])
    e = _up_conv(d, p["up1_w"], gamma=p["up1_g"], beta=p["up1_b"])
    h = jnp.concatenate([a, e], axis=-1)
    # outermost up: ReLU -> convT (with bias) -> Tanh
    out = _up_conv(h, p["up0_w"], bias=p["up0_bias"], apply_tanh=True)
    return jnp.transpose(out, (0, 3, 1, 2)).astype(jnp.float32)      # NHWC -> NCHW
# TODO(synk): Dropout / InstanceNorm variants of the block are not exercised by this
# configuration (use_dropout=False, norm_layer=BatchNorm2d) and are not implemented.


# ----------------------------------------------------------------------------------- main
if __name__ == "__main__":
    key = jax.random.PRNGKey(0)
    k_x, k_p = jax.random.split(key)

    input_nc, output_nc, ngf = 3, 3, 8
    x = jax.random.normal(k_x, (2, input_nc, 16, 16), dtype=jnp.float32)
    params = init_params(k_p, input_nc, output_nc, ngf)

    fwd = jax.jit(unet_block_forward)
    y = fwd(params, x)
    jax.block_until_ready(y)

    assert y.shape == (2, output_nc, 16, 16), y.shape
    assert bool(jnp.all(jnp.isfinite(y)))
    assert bool(jnp.all(jnp.abs(y) <= 1.0))   # tanh output range
    print("KERNEL_OK")
</pallas_src>

<mosaic_0001>
module attributes {stable_mosaic.version = 11 : i64} {
  func.func @_conv_kernel(%arg0: i32, %arg1: i32, %arg2: memref<128x128xbf16, #tpu.memory_space<vmem>>, %arg3: memref<128x128xbf16, #tpu.memory_space<vmem>>, %arg4: memref<128x128xbf16, #tpu.memory_space<vmem>>, %arg5: memref<128x128xf32, #tpu.memory_space<vmem>>) attributes {dimension_semantics = [#tpu.dimension_semantics<parallel>, #tpu.dimension_semantics<arbitrary>], iteration_bounds = array<i64: 1, 1>, scalar_prefetch = 0 : i64, scratch_operands = 1 : i64, tpu.core_type = #tpu.core_type<tc>, window_params = [{transform_indices = @transform_0, window_bounds = array<i64: 128, 128>}, {transform_indices = @transform_1, window_bounds = array<i64: 128, 128>}, {transform_indices = @transform_2, window_bounds = array<i64: 128, 128>}]} {
    %c0_i32 = arith.constant 0 : i32
    %0 = arith.cmpi eq, %arg1, %c0_i32 : i32
    %1 = arith.extui %0 : i1 to i32
    %c0_i32_0 = arith.constant 0 : i32
    %2 = arith.cmpi ne, %1, %c0_i32_0 : i32
    scf.if %2 {
      %cst_10 = arith.constant 0.000000e+00 : f32
      %12 = vector.broadcast %cst_10 : f32 to vector<128x128xf32>
      %c0_11 = arith.constant 0 : index
      %c0_12 = arith.constant 0 : index
      %13 = vector.load %arg5[%c0_11, %c0_12] : memref<128x128xf32, #tpu.memory_space<vmem>>, vector<128x128xf32>
      tpu.vector_store %arg5[%c0_11, %c0_12], %12 {strides = array<i32>} : memref<128x128xf32, #tpu.memory_space<vmem>>, vector<128x128xf32>,
    } else {
    }
    %c0 = arith.constant 0 : index
    %c0_1 = arith.constant 0 : index
    %3 = vector.load %arg2[%c0, %c0_1] : memref<128x128xbf16, #tpu.memory_space<vmem>>, vector<128x128xbf16>
    %c0_2 = arith.constant 0 : index
    %c0_3 = arith.constant 0 : index
    %4 = vector.load %arg5[%c0_2, %c0_3] : memref<128x128xf32, #tpu.memory_space<vmem>>, vector<128x128xf32>
    %c0_4 = arith.constant 0 : index
    %c0_5 = arith.constant 0 : index
    %5 = vector.load %arg3[%c0_4, %c0_5] : memref<128x128xbf16, #tpu.memory_space<vmem>>, vector<128x128xbf16>
    %cst = arith.constant dense<0.000000e+00> : vector<128x128xf32>
    %6 = tpu.matmul %3, %5, %cst {dimension_numbers = #tpu.dot_dimension_numbers<[1], [0], [0], [1], [0, 0, 1, 1], [], []>} : vector<128x128xbf16>, vector<128x128xbf16>, vector<128x128xf32> -> vector<128x128xf32>
    %7 = arith.addf %4, %6 : vector<128x128xf32>
    %c0_6 = arith.constant 0 : index
    %c0_7 = arith.constant 0 : index
    %8 = vector.load %arg5[%c0_6, %c0_7] : memref<128x128xf32, #tpu.memory_space<vmem>>, vector<128x128xf32>
    tpu.vector_store %arg5[%c0_6, %c0_7], %7 {strides = array<i32>} : memref<128x128xf32, #tpu.memory_space<vmem>>, vector<128x128xf32>,
    %c0_i32_8 = arith.constant 0 : i32
    %9 = arith.cmpi eq, %arg1, %c0_i32_8 : i32
    %10 = arith.extui %9 : i1 to i32
    %c0_i32_9 = arith.constant 0 : i32
    %11 = arith.cmpi ne, %10, %c0_i32_9 : i32
    scf.if %11 {
      %c0_10 = arith.constant 0 : index
      %c0_11 = arith.constant 0 : index
      %12 = vector.load %arg5[%c0_10, %c0_11] : memref<128x128xf32, #tpu.memory_space<vmem>>, vector<128x128xf32>
      %13 = arith.truncf %12 : vector<128x128xf32> to vector<128x128xbf16>
      %c0_12 = arith.constant 0 : index
      %c0_13 = arith.constant 0 : index
      %14 = vector.load %arg4[%c0_12, %c0_13] : memref<128x128xbf16, #tpu.memory_space<vmem>>, vector<128x128xbf16>
      tpu.vector_store %arg4[%c0_12, %c0_13], %13 {strides = array<i32>} : memref<128x128xbf16, #tpu.memory_space<vmem>>, vector<128x128xbf16>,
    } else {
    }
    return
  }
  func.func @transform_0(%arg0: i32, %arg1: i32) -> (i32, i32) {
    %c0_i32 = arith.constant 0 : i32
    return %arg0, %arg1 : i32, i32
  }
  func.func @transform_1(%arg0: i32, %arg1: i32) -> (i32, i32) {
    %c0_i32 = arith.constant 0 : i32
    %c0_i32_0 = arith.constant 0 : i32
    return %arg1, %c0_i32 : i32, i32
  }
  func.func @transform_2(%arg0: i32, %arg1: i32) -> (i32, i32) {
    %c0_i32 = arith.constant 0 : i32
    %c0_i32_0 = arith.constant 0 : i32
    return %arg0, %c0_i32 : i32, i32
  }
}

module attributes {stable_mosaic.version = 11 : i64} {
  func.func @_bn_kernel(%arg0: i32, %arg1: memref<32x128xbf16, #tpu.memory_space<vmem>>, %arg2: memref<8x128xf32, #tpu.memory_space<vmem>>, %arg3: memref<32x128xbf16, #tpu.memory_space<vmem>>) attributes {dimension_semantics = [#tpu.dimension_semantics<parallel>], iteration_bounds = array<i64: 1>, scalar_prefetch = 0 : i64, scratch_operands = 0 : i64, tpu.core_type = #tpu.core_type<tc>, window_params = [{transform_indices = @transform_0, window_bounds = array<i64: 32, 128>}, {pipeline_mode = #tpu.pipeline_mode<synchronous>, transform_indices = @transform_1, window_bounds = array<i64: 8, 128>}, {transform_indices = @transform_2, window_bounds = array<i64: 32, 128>}]} {
    %c0 = arith.constant 0 : index
    %c0_0 = arith.constant 0 : index
    %0 = vector.load %arg1[%c0, %c0_0] : memref<32x128xbf16, #tpu.memory_space<vmem>>, vector<32x128xbf16>
    %1 = arith.extf %0 : vector<32x128xbf16> to vector<32x128xf32>
    %c0_1 = arith.constant 0 : index
    %c0_2 = arith.constant 0 : index
    %2 = vector.load %arg2[%c0_1, %c0_2] : memref<8x128xf32, #tpu.memory_space<vmem>>, vector<1x128xf32>
    %3 = vector.broadcast %2 : vector<1x128xf32> to vector<32x128xf32>
    %4 = arith.mulf %1, %3 : vector<32x128xf32>
    %c1 = arith.constant 1 : index
    %c0_3 = arith.constant 0 : index
    %5 = vector.load %arg2[%c1, %c0_3] : memref<8x128xf32, #tpu.memory_space<vmem>>, vector<1x128xf32>
    %6 = vector.broadcast %5 : vector<1x128xf32> to vector<32x128xf32>
    %7 = arith.addf %4, %6 : vector<32x128xf32>
    %8 = arith.truncf %7 : vector<32x128xf32> to vector<32x128xbf16>
    %c0_4 = arith.constant 0 : index
    %c0_5 = arith.constant 0 : index
    %9 = vector.load %arg3[%c0_4, %c0_5] : memref<32x128xbf16, #tpu.memory_space<vmem>>, vector<32x128xbf16>
    tpu.vector_store %arg3[%c0_4, %c0_5], %8 {strides = array<i32>} : memref<32x128xbf16, #tpu.memory_space<vmem>>, vector<32x128xbf16>,
    return
  }
  func.func @transform_0(%arg0: i32) -> (i32, i32) {
    %c0_i32 = arith.constant 0 : i32
    %c0_i32_0 = arith.constant 0 : i32
    return %arg0, %c0_i32 : i32, i32
  }
  func.func @transform_1(%arg0: i32) -> (i32, i32) {
    %c0_i32 = arith.constant 0 : i32
    %c0_i32_0 = arith.constant 0 : i32
    %c0_i32_1 = arith.constant 0 : i32
    return %c0_i32, %c0_i32_0 : i32, i32
  }
  func.func @transform_2(%arg0: i32) -> (i32, i32) {
    %c0_i32 = arith.constant 0 : i32
    %c0_i32_0 = arith.constant 0 : i32
    return %arg0, %c0_i32 : i32, i32
  }
}

module attributes {stable_mosaic.version = 11 : i64} {
  func.func @_conv_kernel(%arg0: i32, %arg1: i32, %arg2: memref<32x128xbf16, #tpu.memory_space<vmem>>, %arg3: memref<128x128xbf16, #tpu.memory_space<vmem>>, %arg4: memref<32x128xbf16, #tpu.memory_space<vmem>>, %arg5: memref<1x8x128xf32, #tpu.memory_space<vmem>>, %arg6: memref<32x128xf32, #tpu.memory_space<vmem>>) attributes {dimension_semantics = [#tpu.dimension_semantics<parallel>, #tpu.dimension_semantics<arbitrary>], iteration_bounds = array<i64: 1, 1>, scalar_prefetch = 0 : i64, scratch_operands = 1 : i64, tpu.core_type = #tpu.core_type<tc>, window_params = [{transform_indices = @transform_0, window_bounds = array<i64: 32, 128>}, {transform_indices = @transform_1, window_bounds = array<i64: 128, 128>}, {transform_indices = @transform_2, window_bounds = array<i64: 32, 128>}, {transform_indices = @transform_3, window_bounds = array<i64: 1, 8, 128>}]} {
    %c0_i32 = arith.constant 0 : i32
    %0 = arith.cmpi eq, %arg1, %c0_i32 : i32
    %1 = arith.extui %0 : i1 to i32
    %c0_i32_0 = arith.constant 0 : i32
    %2 = arith.cmpi ne, %1, %c0_i32_0 : i32
    scf.if %2 {
      %cst_12 = arith.constant 0.000000e+00 : f32
      %17 = vector.broadcast %cst_12 : f32 to vector<32x128xf32>
      %c0_13 = arith.constant 0 : index
      %c0_14 = arith.constant 0 : index
      %18 = vector.load %arg6[%c0_13, %c0_14] : memref<32x128xf32, #tpu.memory_space<vmem>>, vector<32x128xf32>
      tpu.vector_store %arg6[%c0_13, %c0_14], %17 {strides = array<i32>} : memref<32x128xf32, #tpu.memory_space<vmem>>, vector<32x128xf32>,
    } else {
    }
    %c0 = arith.constant 0 : index
    %c0_1 = arith.constant 0 : index
    %3 = vector.load %arg2[%c0, %c0_1] : memref<32x128xbf16, #tpu.memory_space<vmem>>, vector<32x128xbf16>
    %cst = arith.constant 0.000000e+00 : bf16
    %4 = vector.broadcast %cst : bf16 to vector<32x128xbf16>
    %5 = arith.cmpf oge, %3, %4 : vector<32x128xbf16>
    %cst_2 = arith.constant 2.001950e-01 : bf16
    %6 = vector.broadcast %cst_2 : bf16 to vector<32x128xbf16>
    %7 = arith.mulf %6, %3 : vector<32x128xbf16>
    %8 = arith.select %5, %3, %7 : vector<32x128xi1>, vector<32x128xbf16>
    %c0_3 = arith.constant 0 : index
    %c0_4 = arith.constant 0 : index
    %9 = vector.load %arg6[%c0_3, %c0_4] : memref<32x128xf32, #tpu.memory_space<vmem>>, vector<32x128xf32>
    %c0_5 = arith.constant 0 : index
    %c0_6 = arith.constant 0 : index
    %10 = vector.load %arg3[%c0_5, %c0_6] : memref<128x128xbf16, #tpu.memory_space<vmem>>, vector<128x128xbf16>
    %cst_7 = arith.constant dense<0.000000e+00> : vector<32x128xf32>
    %11 = tpu.matmul %8, %10, %cst_7 {dimension_numbers = #tpu.dot_dimension_numbers<[1], [0], [0], [1], [0, 0, 1, 1], [], []>} : vector<32x128xbf16>, vector<128x128xbf16>, vector<32x128xf32> -> vector<32x128xf32>
    %12 = arith.addf %9, %11 : vector<32x128xf32>
    %c0_8 = arith.constant 0 : index
    %c0_9 = arith.constant 0 : index
    %13 = vector.load %arg6[%c0_8, %c0_9] : memref<32x128xf32, #tpu.memory_space<vmem>>, vector<32x128xf32>
    tpu.vector_store %arg6[%c0_8, %c0_9], %12 {strides = array<i32>} : memref<32x128xf32, #tpu.memory_space<vmem>>, vector<32x128xf32>,
    %c0_i32_10 = arith.constant 0 : i32
    %14 = arith.cmpi eq, %arg1, %c0_i32_10 : i32
    %15 = arith.extui %14 : i1 to i32
    %c0_i32_11 = arith.constant 0 : i32
    %16 = arith.cmpi ne, %15, %c0_i32_11 : i32
    scf.if %16 {
      %c0_12 = arith.constant 0 : index
      %c0_13 = arith.constant 0 : index
      %17 = vector.load %arg6[%c0_12, %c0_13] : memref<32x128xf32, #tpu.memory_space<vmem>>, vector<32x128xf32>
      %cst_14 = arith.constant dense<0.000000e+00> : vector<128xf32>
      %18 = vector.multi_reduction <add>, %17, %cst_14 [0] : vector<32x128xf32> to vector<128xf32>
      %19 = vector.shape_cast %18 : vector<128xf32> to vector<1x128xf32>
      %20 = arith.mulf %17, %17 : vector<32x128xf32>
      %cst_15 = arith.constant dense<0.000000e+00> : vector<128xf32>
      %21 = vector.multi_reduction <add>, %20, %cst_15 [0] : vector<32x128xf32> to vector<128xf32>
      %22 = vector.shape_cast %21 : vector<128xf32> to vector<1x128xf32>
      %cst_16 = arith.constant 0.000000e+00 : f32
      %23 = vector.broadcast %cst_16 : f32 to vector<1x128xf32>
      %24 = tpu.concatenate %19, %22, %23, %23, %23, %23, %23, %23 in 0 : vector<1x128xf32>, vector<1x128xf32>, vector<1x128xf32>, vector<1x128xf32>, vector<1x128xf32>, vector<1x128xf32>, vector<1x128xf32>, vector<1x128xf32> -> vector<8x128xf32>
      %25 = vector.shape_cast %24 : vector<8x128xf32> to vector<1x8x128xf32>
      %c0_17 = arith.constant 0 : index
      %c0_18 = arith.constant 0 : index
      %c0_19 = arith.constant 0 : index
      %26 = vector.load %arg5[%c0_17, %c0_18, %c0_19] : memref<1x8x128xf32, #tpu.memory_space<vmem>>, vector<1x8x128xf32>
      tpu.vector_store %arg5[%c0_17, %c0_18, %c0_19], %25 {strides = array<i32>} : memref<1x8x128xf32, #tpu.memory_space<vmem>>, vector<1x8x128xf32>,
      %27 = arith.truncf %17 : vector<32x128xf32> to vector<32x128xbf16>
      %c0_20 = arith.constant 0 : index
      %c0_21 = arith.constant 0 : index
      %28 = vector.load %arg4[%c0_20, %c0_21] : memref<32x128xbf16, #tpu.memory_space<vmem>>, vector<32x128xbf16>
      tpu.vector_store %arg4[%c0_20, %c0_21], %27 {strides = array<i32>} : memref<32x128xbf16, #tpu.memory_space<vmem>>, vector<32x128xbf16>,
    } else {
    }
    return
  }
  func.func @transform_0(%arg0: i32, %arg1: i32) -> (i32, i32) {
    %c0_i32 = arith.constant 0 : i32
    return %arg0, %arg1 : i32, i32
  }
  func.func @transform_1(%arg0: i32, %arg1: i32) -> (i32, i32) {
    %c0_i32 = arith.constant 0 : i32
    %c0_i32_0 = arith.constant 0 : i32
    return %arg1, %c0_i32 : i32, i32
  }
  func.func @transform_2(%arg0: i32, %arg1: i32) -> (i32, i32) {
    %c0_i32 = arith.constant 0 : i32
    %c0_i32_0 = arith.constant 0 : i32
    return %arg0, %c0_i32 : i32, i32
  }
  func.func @transform_3(%arg0: i32, %arg1: i32) -> (i32, i32, i32) {
    %c0_i32 = arith.constant 0 : i32
    %c0_i32_0 = arith.constant 0 : i32
    %c0_i32_1 = arith.constant 0 : i32
    return %arg0, %c0_i32, %c0_i32_0 : i32, i32, i32
  }
}

module attributes {stable_mosaic.version = 11 : i64} {
  func.func @_conv_kernel(%arg0: i32, %arg1: i32, %arg2: memref<8x256xbf16, #tpu.memory_space<vmem>>, %arg3: memref<256x128xbf16, #tpu.memory_space<vmem>>, %arg4: memref<8x128xbf16, #tpu.memory_space<vmem>>, %arg5: memref<8x128xf32, #tpu.memory_space<vmem>>) attributes {dimension_semantics = [#tpu.dimension_semantics<parallel>, #tpu.dimension_semantics<arbitrary>], iteration_bounds = array<i64: 1, 1>, scalar_prefetch = 0 : i64, scratch_operands = 1 : i64, tpu.core_type = #tpu.core_type<tc>, window_params = [{transform_indices = @transform_0, window_bounds = array<i64: 8, 256>}, {transform_indices = @transform_1, window_bounds = array<i64: 256, 128>}, {transform_indices = @transform_2, window_bounds = array<i64: 8, 128>}]} {
    %c0_i32 = arith.constant 0 : i32
    %0 = arith.cmpi eq, %arg1, %c0_i32 : i32
    %1 = arith.extui %0 : i1 to i32
    %c0_i32_0 = arith.constant 0 : i32
    %2 = arith.cmpi ne, %1, %c0_i32_0 : i32
    scf.if %2 {
      %cst_12 = arith.constant 0.000000e+00 : f32
      %17 = vector.broadcast %cst_12 : f32 to vector<8x128xf32>
      %c0_13 = arith.constant 0 : index
      %c0_14 = arith.constant 0 : index
      %18 = vector.load %arg5[%c0_13, %c0_14] : memref<8x128xf32, #tpu.memory_space<vmem>>, vector<8x128xf32>
      tpu.vector_store %arg5[%c0_13, %c0_14], %17 {strides = array<i32>} : memref<8x128xf32, #tpu.memory_space<vmem>>, vector<8x128xf32>,
    } else {
    }
    %c0 = arith.constant 0 : index
    %c0_1 = arith.constant 0 : index
    %3 = vector.load %arg2[%c0, %c0_1] : memref<8x256xbf16, #tpu.memory_space<vmem>>, vector<8x256xbf16>
    %cst = arith.constant 0.000000e+00 : bf16
    %4 = vector.broadcast %cst : bf16 to vector<8x256xbf16>
    %5 = arith.cmpf oge, %3, %4 : vector<8x256xbf16>
    %cst_2 = arith.constant 2.001950e-01 : bf16
    %6 = vector.broadcast %cst_2 : bf16 to vector<8x256xbf16>
    %7 = arith.mulf %6, %3 : vector<8x256xbf16>
    %8 = arith.select %5, %3, %7 : vector<8x256xi1>, vector<8x256xbf16>
    %c0_3 = arith.constant 0 : index
    %c0_4 = arith.constant 0 : index
    %9 = vector.load %arg5[%c0_3, %c0_4] : memref<8x128xf32, #tpu.memory_space<vmem>>, vector<8x128xf32>
    %c0_5 = arith.constant 0 : index
    %c0_6 = arith.constant 0 : index
    %10 = vector.load %arg3[%c0_5, %c0_6] : memref<256x128xbf16, #tpu.memory_space<vmem>>, vector<256x128xbf16>
    %cst_7 = arith.constant dense<0.000000e+00> : vector<8x128xf32>
    %11 = tpu.matmul %8, %10, %cst_7 {dimension_numbers = #tpu.dot_dimension_numbers<[1], [0], [0], [1], [0, 0, 1, 1], [], []>} : vector<8x256xbf16>, vector<256x128xbf16>, vector<8x128xf32> -> vector<8x128xf32>
    %12 = arith.addf %9, %11 : vector<8x128xf32>
    %c0_8 = arith.constant 0 : index
    %c0_9 = arith.constant 0 : index
    %13 = vector.load %arg5[%c0_8, %c0_9] : memref<8x128xf32, #tpu.memory_space<vmem>>, vector<8x128xf32>
    tpu.vector_store %arg5[%c0_8, %c0_9], %12 {strides = array<i32>} : memref<8x128xf32, #tpu.memory_space<vmem>>, vector<8x128xf32>,
    %c0_i32_10 = arith.constant 0 : i32
    %14 = arith.cmpi eq, %arg1, %c0_i32_10 : i32
    %15 = arith.extui %14 : i1 to i32
    %c0_i32_11 = arith.constant 0 : i32
    %16 = arith.cmpi ne, %15, %c0_i32_11 : i32
    scf.if %16 {
      %c0_12 = arith.constant 0 : index
      %c0_13 = arith.constant 0 : index
      %17 = vector.load %arg5[%c0_12, %c0_13] : memref<8x128xf32, #tpu.memory_space<vmem>>, vector<8x128xf32>
      %18 = arith.truncf %17 : vector<8x128xf32> to vector<8x128xbf16>
      %c0_14 = arith.constant 0 : index
      %c0_15 = arith.constant 0 : index
      %19 = vector.load %arg4[%c0_14, %c0_15] : memref<8x128xbf16, #tpu.memory_space<vmem>>, vector<8x128xbf16>
      tpu.vector_store %arg4[%c0_14, %c0_15], %18 {strides = array<i32>} : memref<8x128xbf16, #tpu.memory_space<vmem>>, vector<8x128xbf16>,
    } else {
    }
    return
  }
  func.func @transform_0(%arg0: i32, %arg1: i32) -> (i32, i32) {
    %c0_i32 = arith.constant 0 : i32
    return %arg0, %arg1 : i32, i32
  }
  func.func @transform_1(%arg0: i32, %arg1: i32) -> (i32, i32) {
    %c0_i32 = arith.constant 0 : i32
    %c0_i32_0 = arith.constant 0 : i32
    return %arg1, %c0_i32 : i32, i32
  }
  func.func @transform_2(%arg0: i32, %arg1: i32) -> (i32, i32) {
    %c0_i32 = arith.constant 0 : i32
    %c0_i32_0 = arith.constant 0 : i32
    return %arg0, %c0_i32 : i32, i32
  }
}

module attributes {stable_mosaic.version = 11 : i64} {
  func.func @_conv_kernel(%arg0: i32, %arg1: i32, %arg2: memref<8x128xbf16, #tpu.memory_space<vmem>>, %arg3: memref<128x128xbf16, #tpu.memory_space<vmem>>, %arg4: memref<8x128xbf16, #tpu.memory_space<vmem>>, %arg5: memref<1x8x128xf32, #tpu.memory_space<vmem>>, %arg6: memref<8x128xf32, #tpu.memory_space<vmem>>) attributes {dimension_semantics = [#tpu.dimension_semantics<parallel>, #tpu.dimension_semantics<arbitrary>], iteration_bounds = array<i64: 1, 1>, scalar_prefetch = 0 : i64, scratch_operands = 1 : i64, tpu.core_type = #tpu.core_type<tc>, window_params = [{transform_indices = @transform_0, window_bounds = array<i64: 8, 128>}, {transform_indices = @transform_1, window_bounds = array<i64: 128, 128>}, {transform_indices = @transform_2, window_bounds = array<i64: 8, 128>}, {transform_indices = @transform_3, window_bounds = array<i64: 1, 8, 128>}]} {
    %c0_i32 = arith.constant 0 : i32
    %0 = arith.cmpi eq, %arg1, %c0_i32 : i32
    %1 = arith.extui %0 : i1 to i32
    %c0_i32_0 = arith.constant 0 : i32
    %2 = arith.cmpi ne, %1, %c0_i32_0 : i32
    scf.if %2 {
      %cst_11 = arith.constant 0.000000e+00 : f32
      %14 = vector.broadcast %cst_11 : f32 to vector<8x128xf32>
      %c0_12 = arith.constant 0 : index
      %c0_13 = arith.constant 0 : index
      %15 = vector.load %arg6[%c0_12, %c0_13] : memref<8x128xf32, #tpu.memory_space<vmem>>, vector<8x128xf32>
      tpu.vector_store %arg6[%c0_12, %c0_13], %14 {strides = array<i32>} : memref<8x128xf32, #tpu.memory_space<vmem>>, vector<8x128xf32>,
    } else {
    }
    %c0 = arith.constant 0 : index
    %c0_1 = arith.constant 0 : index
    %3 = vector.load %arg2[%c0, %c0_1] : memref<8x128xbf16, #tpu.memory_space<vmem>>, vector<8x128xbf16>
    %cst = arith.constant 0.000000e+00 : bf16
    %4 = vector.broadcast %cst : bf16 to vector<8x128xbf16>
    %5 = arith.maximumf %3, %4 : vector<8x128xbf16>
    %c0_2 = arith.constant 0 : index
    %c0_3 = arith.constant 0 : index
    %6 = vector.load %arg6[%c0_2, %c0_3] : memref<8x128xf32, #tpu.memory_space<vmem>>, vector<8x128xf32>
    %c0_4 = arith.constant 0 : index
    %c0_5 = arith.constant 0 : index
    %7 = vector.load %arg3[%c0_4, %c0_5] : memref<128x128xbf16, #tpu.memory_space<vmem>>, vector<128x128xbf16>
    %cst_6 = arith.constant dense<0.000000e+00> : vector<8x128xf32>
    %8 = tpu.matmul %5, %7, %cst_6 {dimension_numbers = #tpu.dot_dimension_numbers<[1], [0], [0], [1], [0, 0, 1, 1], [], []>} : vector<8x128xbf16>, vector<128x128xbf16>, vector<8x128xf32> -> vector<8x128xf32>
    %9 = arith.addf %6, %8 : vector<8x128xf32>
    %c0_7 = arith.constant 0 : index
    %c0_8 = arith.constant 0 : index
    %10 = vector.load %arg6[%c0_7, %c0_8] : memref<8x128xf32, #tpu.memory_space<vmem>>, vector<8x128xf32>
    tpu.vector_store %arg6[%c0_7, %c0_8], %9 {strides = array<i32>} : memref<8x128xf32, #tpu.memory_space<vmem>>, vector<8x128xf32>,
    %c0_i32_9 = arith.constant 0 : i32
    %11 = arith.cmpi eq, %arg1, %c0_i32_9 : i32
    %12 = arith.extui %11 : i1 to i32
    %c0_i32_10 = arith.constant 0 : i32
    %13 = arith.cmpi ne, %12, %c0_i32_10 : i32
    scf.if %13 {
      %c0_11 = arith.constant 0 : index
      %c0_12 = arith.constant 0 : index
      %14 = vector.load %arg6[%c0_11, %c0_12] : memref<8x128xf32, #tpu.memory_space<vmem>>, vector<8x128xf32>
      %cst_13 = arith.constant dense<0.000000e+00> : vector<128xf32>
      %15 = vector.multi_reduction <add>, %14, %cst_13 [0] : vector<8x128xf32> to vector<128xf32>
      %16 = vector.shape_cast %15 : vector<128xf32> to vector<1x128xf32>
      %17 = arith.mulf %14, %14 : vector<8x128xf32>
      %cst_14 = arith.constant dense<0.000000e+00> : vector<128xf32>
      %18 = vector.multi_reduction <add>, %17, %cst_14 [0] : vector<8x128xf32> to vector<128xf32>
      %19 = vector.shape_cast %18 : vector<128xf32> to vector<1x128xf32>
      %cst_15 = arith.constant 0.000000e+00 : f32
      %20 = vector.broadcast %cst_15 : f32 to vector<1x128xf32>
      %21 = tpu.concatenate %16, %19, %20, %20, %20, %20, %20, %20 in 0 : vector<1x128xf32>, vector<1x128xf32>, vector<1x128xf32>, vector<1x128xf32>, vector<1x128xf32>, vector<1x128xf32>, vector<1x128xf32>, vector<1x128xf32> -> vector<8x128xf32>
      %22 = vector.shape_cast %21 : vector<8x128xf32> to vector<1x8x128xf32>
      %c0_16 = arith.constant 0 : index
      %c0_17 = arith.constant 0 : index
      %c0_18 = arith.constant 0 : index
      %23 = vector.load %arg5[%c0_16, %c0_17, %c0_18] : memref<1x8x128xf32, #tpu.memory_space<vmem>>, vector<1x8x128xf32>
      tpu.vector_store %arg5[%c0_16, %c0_17, %c0_18], %22 {strides = array<i32>} : memref<1x8x128xf32, #tpu.memory_space<vmem>>, vector<1x8x128xf32>,
      %24 = arith.truncf %14 : vector<8x128xf32> to vector<8x128xbf16>
      %c0_19 = arith.constant 0 : index
      %c0_20 = arith.constant 0 : index
      %25 = vector.load %arg4[%c0_19, %c0_20] : memref<8x128xbf16, #tpu.memory_space<vmem>>, vector<8x128xbf16>
      tpu.vector_store %arg4[%c0_19, %c0_20], %24 {strides = array<i32>} : memref<8x128xbf16, #tpu.memory_space<vmem>>, vector<8x128xbf16>,
    } else {
    }
    return
  }
  func.func @transform_0(%arg0: i32, %arg1: i32) -> (i32, i32) {
    %c0_i32 = arith.constant 0 : i32
    return %arg0, %arg1 : i32, i32
  }
  func.func @transform_1(%arg0: i32, %arg1: i32) -> (i32, i32) {
    %c0_i32 = arith.constant 0 : i32
    %c0_i32_0 = arith.constant 0 : i32
    return %arg1, %c0_i32 : i32, i32
  }
  func.func @transform_2(%arg0: i32, %arg1: i32) -> (i32, i32) {
    %c0_i32 = arith.constant 0 : i32
    %c0_i32_0 = arith.constant 0 : i32
    return %arg0, %c0_i32 : i32, i32
  }
  func.func @transform_3(%arg0: i32, %arg1: i32) -> (i32, i32, i32) {
    %c0_i32 = arith.constant 0 : i32
    %c0_i32_0 = arith.constant 0 : i32
    %c0_i32_1 = arith.constant 0 : i32
    return %arg0, %c0_i32, %c0_i32_0 : i32, i32, i32
  }
}

module attributes {stable_mosaic.version = 11 : i64} {
  func.func @_conv_kernel(%arg0: i32, %arg1: i32, %arg2: memref<32x128xbf16, #tpu.memory_space<vmem>>, %arg3: memref<128x128xbf16, #tpu.memory_space<vmem>>, %arg4: memref<32x128xbf16, #tpu.memory_space<vmem>>, %arg5: memref<1x8x128xf32, #tpu.memory_space<vmem>>, %arg6: memref<32x128xf32, #tpu.memory_space<vmem>>) attributes {dimension_semantics = [#tpu.dimension_semantics<parallel>, #tpu.dimension_semantics<arbitrary>], iteration_bounds = array<i64: 1, 1>, scalar_prefetch = 0 : i64, scratch_operands = 1 : i64, tpu.core_type = #tpu.core_type<tc>, window_params = [{transform_indices = @transform_0, window_bounds = array<i64: 32, 128>}, {transform_indices = @transform_1, window_bounds = array<i64: 128, 128>}, {transform_indices = @transform_2, window_bounds = array<i64: 32, 128>}, {transform_indices = @transform_3, window_bounds = array<i64: 1, 8, 128>}]} {
    %c0_i32 = arith.constant 0 : i32
    %0 = arith.cmpi eq, %arg1, %c0_i32 : i32
    %1 = arith.extui %0 : i1 to i32
    %c0_i32_0 = arith.constant 0 : i32
    %2 = arith.cmpi ne, %1, %c0_i32_0 : i32
    scf.if %2 {
      %cst_11 = arith.constant 0.000000e+00 : f32
      %14 = vector.broadcast %cst_11 : f32 to vector<32x128xf32>
      %c0_12 = arith.constant 0 : index
      %c0_13 = arith.constant 0 : index
      %15 = vector.load %arg6[%c0_12, %c0_13] : memref<32x128xf32, #tpu.memory_space<vmem>>, vector<32x128xf32>
      tpu.vector_store %arg6[%c0_12, %c0_13], %14 {strides = array<i32>} : memref<32x128xf32, #tpu.memory_space<vmem>>, vector<32x128xf32>,
    } else {
    }
    %c0 = arith.constant 0 : index
    %c0_1 = arith.constant 0 : index
    %3 = vector.load %arg2[%c0, %c0_1] : memref<32x128xbf16, #tpu.memory_space<vmem>>, vector<32x128xbf16>
    %cst = arith.constant 0.000000e+00 : bf16
    %4 = vector.broadcast %cst : bf16 to vector<32x128xbf16>
    %5 = arith.maximumf %3, %4 : vector<32x128xbf16>
    %c0_2 = arith.constant 0 : index
    %c0_3 = arith.constant 0 : index
    %6 = vector.load %arg6[%c0_2, %c0_3] : memref<32x128xf32, #tpu.memory_space<vmem>>, vector<32x128xf32>
    %c0_4 = arith.constant 0 : index
    %c0_5 = arith.constant 0 : index
    %7 = vector.load %arg3[%c0_4, %c0_5] : memref<128x128xbf16, #tpu.memory_space<vmem>>, vector<128x128xbf16>
    %cst_6 = arith.constant dense<0.000000e+00> : vector<32x128xf32>
    %8 = tpu.matmul %5, %7, %cst_6 {dimension_numbers = #tpu.dot_dimension_numbers<[1], [0], [0], [1], [0, 0, 1, 1], [], []>} : vector<32x128xbf16>, vector<128x128xbf16>, vector<32x128xf32> -> vector<32x128xf32>
    %9 = arith.addf %6, %8 : vector<32x128xf32>
    %c0_7 = arith.constant 0 : index
    %c0_8 = arith.constant 0 : index
    %10 = vector.load %arg6[%c0_7, %c0_8] : memref<32x128xf32, #tpu.memory_space<vmem>>, vector<32x128xf32>
    tpu.vector_store %arg6[%c0_7, %c0_8], %9 {strides = array<i32>} : memref<32x128xf32, #tpu.memory_space<vmem>>, vector<32x128xf32>,
    %c0_i32_9 = arith.constant 0 : i32
    %11 = arith.cmpi eq, %arg1, %c0_i32_9 : i32
    %12 = arith.extui %11 : i1 to i32
    %c0_i32_10 = arith.constant 0 : i32
    %13 = arith.cmpi ne, %12, %c0_i32_10 : i32
    scf.if %13 {
      %c0_11 = arith.constant 0 : index
      %c0_12 = arith.constant 0 : index
      %14 = vector.load %arg6[%c0_11, %c0_12] : memref<32x128xf32, #tpu.memory_space<vmem>>, vector<32x128xf32>
      %cst_13 = arith.constant dense<0.000000e+00> : vector<128xf32>
      %15 = vector.multi_reduction <add>, %14, %cst_13 [0] : vector<32x128xf32> to vector<128xf32>
      %16 = vector.shape_cast %15 : vector<128xf32> to vector<1x128xf32>
      %17 = arith.mulf %14, %14 : vector<32x128xf32>
      %cst_14 = arith.constant dense<0.000000e+00> : vector<128xf32>
      %18 = vector.multi_reduction <add>, %17, %cst_14 [0] : vector<32x128xf32> to vector<128xf32>
      %19 = vector.shape_cast %18 : vector<128xf32> to vector<1x128xf32>
      %cst_15 = arith.constant 0.000000e+00 : f32
      %20 = vector.broadcast %cst_15 : f32 to vector<1x128xf32>
      %21 = tpu.concatenate %16, %19, %20, %20, %20, %20, %20, %20 in 0 : vector<1x128xf32>, vector<1x128xf32>, vector<1x128xf32>, vector<1x128xf32>, vector<1x128xf32>, vector<1x128xf32>, vector<1x128xf32>, vector<1x128xf32> -> vector<8x128xf32>
      %22 = vector.shape_cast %21 : vector<8x128xf32> to vector<1x8x128xf32>
      %c0_16 = arith.constant 0 : index
      %c0_17 = arith.constant 0 : index
      %c0_18 = arith.constant 0 : index
      %23 = vector.load %arg5[%c0_16, %c0_17, %c0_18] : memref<1x8x128xf32, #tpu.memory_space<vmem>>, vector<1x8x128xf32>
      tpu.vector_store %arg5[%c0_16, %c0_17, %c0_18], %22 {strides = array<i32>} : memref<1x8x128xf32, #tpu.memory_space<vmem>>, vector<1x8x128xf32>,
      %24 = arith.truncf %14 : vector<32x128xf32> to vector<32x128xbf16>
      %c0_19 = arith.constant 0 : index
      %c0_20 = arith.constant 0 : index
      %25 = vector.load %arg4[%c0_19, %c0_20] : memref<32x128xbf16, #tpu.memory_space<vmem>>, vector<32x128xbf16>
      tpu.vector_store %arg4[%c0_19, %c0_20], %24 {strides = array<i32>} : memref<32x128xbf16, #tpu.memory_space<vmem>>, vector<32x128xbf16>,
    } else {
    }
    return
  }
  func.func @transform_0(%arg0: i32, %arg1: i32) -> (i32, i32) {
    %c0_i32 = arith.constant 0 : i32
    return %arg0, %arg1 : i32, i32
  }
  func.func @transform_1(%arg0: i32, %arg1: i32) -> (i32, i32) {
    %c0_i32 = arith.constant 0 : i32
    %c0_i32_0 = arith.constant 0 : i32
    return %arg1, %c0_i32 : i32, i32
  }
  func.func @transform_2(%arg0: i32, %arg1: i32) -> (i32, i32) {
    %c0_i32 = arith.constant 0 : i32
    %c0_i32_0 = arith.constant 0 : i32
    return %arg0, %c0_i32 : i32, i32
  }
  func.func @transform_3(%arg0: i32, %arg1: i32) -> (i32, i32, i32) {
    %c0_i32 = arith.constant 0 : i32
    %c0_i32_0 = arith.constant 0 : i32
    %c0_i32_1 = arith.constant 0 : i32
    return %arg0, %c0_i32, %c0_i32_0 : i32, i32, i32
  }
}

module attributes {stable_mosaic.version = 11 : i64} {
  func.func @_bn_kernel(%arg0: i32, %arg1: memref<128x128xbf16, #tpu.memory_space<vmem>>, %arg2: memref<8x128xf32, #tpu.memory_space<vmem>>, %arg3: memref<128x128xbf16, #tpu.memory_space<vmem>>) attributes {dimension_semantics = [#tpu.dimension_semantics<parallel>], iteration_bounds = array<i64: 1>, scalar_prefetch = 0 : i64, scratch_operands = 0 : i64, tpu.core_type = #tpu.core_type<tc>, window_params = [{transform_indices = @transform_0, window_bounds = array<i64: 128, 128>}, {pipeline_mode = #tpu.pipeline_mode<synchronous>, transform_indices = @transform_1, window_bounds = array<i64: 8, 128>}, {transform_indices = @transform_2, window_bounds = array<i64: 128, 128>}]} {
    %c0 = arith.constant 0 : index
    %c0_0 = arith.constant 0 : index
    %0 = vector.load %arg1[%c0, %c0_0] : memref<128x128xbf16, #tpu.memory_space<vmem>>, vector<128x128xbf16>
    %1 = arith.extf %0 : vector<128x128xbf16> to vector<128x128xf32>
    %c0_1 = arith.constant 0 : index
    %c0_2 = arith.constant 0 : index
    %2 = vector.load %arg2[%c0_1, %c0_2] : memref<8x128xf32, #tpu.memory_space<vmem>>, vector<1x128xf32>
    %3 = vector.broadcast %2 : vector<1x128xf32> to vector<128x128xf32>
    %4 = arith.mulf %1, %3 : vector<128x128xf32>
    %c1 = arith.constant 1 : index
    %c0_3 = arith.constant 0 : index
    %5 = vector.load %arg2[%c1, %c0_3] : memref<8x128xf32, #tpu.memory_space<vmem>>, vector<1x128xf32>
    %6 = vector.broadcast %5 : vector<1x128xf32> to vector<128x128xf32>
    %7 = arith.addf %4, %6 : vector<128x128xf32>
    %8 = arith.truncf %7 : vector<128x128xf32> to vector<128x128xbf16>
    %c0_4 = arith.constant 0 : index
    %c0_5 = arith.constant 0 : index
    %9 = vector.load %arg3[%c0_4, %c0_5] : memref<128x128xbf16, #tpu.memory_space<vmem>>, vector<128x128xbf16>
    tpu.vector_store %arg3[%c0_4, %c0_5], %8 {strides = array<i32>} : memref<128x128xbf16, #tpu.memory_space<vmem>>, vector<128x128xbf16>,
    return
  }
  func.func @transform_0(%arg0: i32) -> (i32, i32) {
    %c0_i32 = arith.constant 0 : i32
    %c0_i32_0 = arith.constant 0 : i32
    return %arg0, %c0_i32 : i32, i32
  }
  func.func @transform_1(%arg0: i32) -> (i32, i32) {
    %c0_i32 = arith.constant 0 : i32
    %c0_i32_0 = arith.constant 0 : i32
    %c0_i32_1 = arith.constant 0 : i32
    return %c0_i32, %c0_i32_0 : i32, i32
  }
  func.func @transform_2(%arg0: i32) -> (i32, i32) {
    %c0_i32 = arith.constant 0 : i32
    %c0_i32_0 = arith.constant 0 : i32
    return %arg0, %c0_i32 : i32, i32
  }
}

module attributes {stable_mosaic.version = 11 : i64} {
  func.func @_conv_kernel(%arg0: i32, %arg1: i32, %arg2: memref<128x128xbf16, #tpu.memory_space<vmem>>, %arg3: memref<128x128xbf16, #tpu.memory_space<vmem>>, %arg4: memref<1x128xf32, #tpu.memory_space<vmem>>, %arg5: memref<128x128xbf16, #tpu.memory_space<vmem>>, %arg6: memref<128x128xf32, #tpu.memory_space<vmem>>) attributes {dimension_semantics = [#tpu.dimension_semantics<parallel>, #tpu.dimension_semantics<arbitrary>], iteration_bounds = array<i64: 1, 1>, scalar_prefetch = 0 : i64, scratch_operands = 1 : i64, tpu.core_type = #tpu.core_type<tc>, window_params = [{transform_indices = @transform_0, window_bounds = array<i64: 128, 128>}, {transform_indices = @transform_1, window_bounds = array<i64: 128, 128>}, {pipeline_mode = #tpu.pipeline_mode<synchronous>, transform_indices = @transform_2, window_bounds = array<i64: 1, 128>}, {transform_indices = @transform_3, window_bounds = array<i64: 128, 128>}]} {
    %c0_i32 = arith.constant 0 : i32
    %0 = arith.cmpi eq, %arg1, %c0_i32 : i32
    %1 = arith.extui %0 : i1 to i32
    %c0_i32_0 = arith.constant 0 : i32
    %2 = arith.cmpi ne, %1, %c0_i32_0 : i32
    scf.if %2 {
      %cst_11 = arith.constant 0.000000e+00 : f32
      %14 = vector.broadcast %cst_11 : f32 to vector<128x128xf32>
      %c0_12 = arith.constant 0 : index
      %c0_13 = arith.constant 0 : index
      %15 = vector.load %arg6[%c0_12, %c0_13] : memref<128x128xf32, #tpu.memory_space<vmem>>, vector<128x128xf32>
      tpu.vector_store %arg6[%c0_12, %c0_13], %14 {strides = array<i32>} : memref<128x128xf32, #tpu.memory_space<vmem>>, vector<128x128xf32>,
    } else {
    }
    %c0 = arith.constant 0 : index
    %c0_1 = arith.constant 0 : index
    %3 = vector.load %arg2[%c0, %c0_1] : memref<128x128xbf16, #tpu.memory_space<vmem>>, vector<128x128xbf16>
    %cst = arith.constant 0.000000e+00 : bf16
    %4 = vector.broadcast %cst : bf16 to vector<128x128xbf16>
    %5 = arith.maximumf %3, %4 : vector<128x128xbf16>
    %c0_2 = arith.constant 0 : index
    %c0_3 = arith.constant 0 : index
    %6 = vector.load %arg6[%c0_2, %c0_3] : memref<128x128xf32, #tpu.memory_space<vmem>>, vector<128x128xf32>
    %c0_4 = arith.constant 0 : index
    %c0_5 = arith.constant 0 : index
    %7 = vector.load %arg3[%c0_4, %c0_5] : memref<128x128xbf16, #tpu.memory_space<vmem>>, vector<128x128xbf16>
    %cst_6 = arith.constant dense<0.000000e+00> : vector<128x128xf32>
    %8 = tpu.matmul %5, %7, %cst_6 {dimension_numbers = #tpu.dot_dimension_numbers<[1], [0], [0], [1], [0, 0, 1, 1], [], []>} : vector<128x128xbf16>, vector<128x128xbf16>, vector<128x128xf32> -> vector<128x128xf32>
    %9 = arith.addf %6, %8 : vector<128x128xf32>
    %c0_7 = arith.constant 0 : index
    %c0_8 = arith.constant 0 : index
    %10 = vector.load %arg6[%c0_7, %c0_8] : memref<128x128xf32, #tpu.memory_space<vmem>>, vector<128x128xf32>
    tpu.vector_store %arg6[%c0_7, %c0_8], %9 {strides = array<i32>} : memref<128x128xf32, #tpu.memory_space<vmem>>, vector<128x128xf32>,
    %c0_i32_9 = arith.constant 0 : i32
    %11 = arith.cmpi eq, %arg1, %c0_i32_9 : i32
    %12 = arith.extui %11 : i1 to i32
    %c0_i32_10 = arith.constant 0 : i32
    %13 = arith.cmpi ne, %12, %c0_i32_10 : i32
    scf.if %13 {
      %c0_11 = arith.constant 0 : index
      %c0_12 = arith.constant 0 : index
      %14 = vector.load %arg6[%c0_11, %c0_12] : memref<128x128xf32, #tpu.memory_space<vmem>>, vector<128x128xf32>
      %c0_13 = arith.constant 0 : index
      %c0_14 = arith.constant 0 : index
      %15 = vector.load %arg4[%c0_13, %c0_14] : memref<1x128xf32, #tpu.memory_space<vmem>>, vector<1x128xf32>
      %16 = vector.broadcast %15 : vector<1x128xf32> to vector<128x128xf32>
      %17 = arith.addf %14, %16 : vector<128x128xf32>
      %18 = math.tanh %17 : vector<128x128xf32>
      %19 = arith.truncf %18 : vector<128x128xf32> to vector<128x128xbf16>
      %c0_15 = arith.constant 0 : index
      %c0_16 = arith.constant 0 : index
      %20 = vector.load %arg5[%c0_15, %c0_16] : memref<128x128xbf16, #tpu.memory_space<vmem>>, vector<128x128xbf16>
      tpu.vector_store %arg5[%c0_15, %c0_16], %19 {strides = array<i32>} : memref<128x128xbf16, #tpu.memory_space<vmem>>, vector<128x128xbf16>,
    } else {
    }
    return
  }
  func.func @transform_0(%arg0: i32, %arg1: i32) -> (i32, i32) {
    %c0_i32 = arith.constant 0 : i32
    return %arg0, %arg1 : i32, i32
  }
  func.func @transform_1(%arg0: i32, %arg1: i32) -> (i32, i32) {
    %c0_i32 = arith.constant 0 : i32
    %c0_i32_0 = arith.constant 0 : i32
    return %arg1, %c0_i32 : i32, i32
  }
  func.func @transform_2(%arg0: i32, %arg1: i32) -> (i32, i32) {
    %c0_i32 = arith.constant 0 : i32
    %c0_i32_0 = arith.constant 0 : i32
    %c0_i32_1 = arith.constant 0 : i32
    return %c0_i32, %c0_i32_0 : i32, i32
  }
  func.func @transform_3(%arg0: i32, %arg1: i32) -> (i32, i32) {
    %c0_i32 = arith.constant 0 : i32
    %c0_i32_0 = arith.constant 0 : i32
    return %arg0, %c0_i32 : i32, i32
  }
}

</mosaic_0001>

<llo_original>
// kernel: unet_block_forward.18
$region0: #{unet_block_forward.18}
  #allocation0 [shape = 'u32[]', space=smem, size = 0x4, offset = 0x4, fixed_abs, tag = 'smem constant byte address 0x4 - core index']
  #allocation1 [shape = 'u32[72,128]{1,0:T(1,128)}', space=vmem, size = 0x9000, scoped, tag = 'internal scratch']
  #allocation2 [shape = 'f32[128,128]{1,0:T(8,128)}', space=vmem, size = 0x10000, scoped, tag = 'scratch operand']
  %s0 = inlined_call_operand.vmem [shape: bf16[128,128], index: 0, kind: input, shape index: {}]
  %s1 = inlined_call_operand.vmem [shape: bf16[128,128], index: 1, kind: input, shape index: {}]
  %s2 = inlined_call_operand.vmem [shape: bf16[128,128], index: 2, kind: output, shape index: {}]
  %s3 = sld [smem:[#allocation0]]
  $region26: #{unet_block_forward.18} parent=0
    _
  %s5 = ssub.s32 1, %s3
  %s6 = scalar_select 0, %s5, %s3
  // Predicated region
  $region2: #{unet_block_forward.18} parent=0 // pred_check
    _
  $region3: #{unet_block_forward.18} parent=0 // pred_check_branch
    %8 = sbr.rel (0) target = $region5
  $region4: #{unet_block_forward.18} parent=0 // pred_region
    _
  $region5: #{unet_block_forward.18} parent=0 // pred_fallthru
    _
  // Predicated region
  $region6: #{unet_block_forward.18} parent=0 // pred_check
    _
  $region7: #{unet_block_forward.18} parent=0 // pred_check_branch
    %10 = sbr.rel (0) target = $region9
  $region8: #{unet_block_forward.18} parent=0 // pred_region
    _
  $region9: #{unet_block_forward.18} parent=0 // pred_fallthru
    _
  %p11 = scmp.eq.s32.totalorder 0, 0
  // Predicated region
  $region10: #{unet_block_forward.18} parent=0 // pred_check
    %p12 = pneg %p11
  $region11: #{unet_block_forward.18} parent=0 // pred_check_branch
    %14 = sbr.rel (%p12) target = $region13
  $region12: #{unet_block_forward.18} parent=0 // pred_region
    %15 = vst [vmem:[#allocation2] sm:$0xff] 0.0
    %16 = vst [vmem:[#allocation2 + $0x8] sm:$0xff] 0.0
    %17 = vst [vmem:[#allocation2 + $0x10] sm:$0xff] 0.0
    %18 = vst [vmem:[#allocation2 + $0x18] sm:$0xff] 0.0
    %19 = vst [vmem:[#allocation2 + $0x20] sm:$0xff] 0.0
    %20 = vst [vmem:[#allocation2 + $0x28] sm:$0xff] 0.0
    %21 = vst [vmem:[#allocation2 + $0x30] sm:$0xff] 0.0
    %22 = vst [vmem:[#allocation2 + $0x38] sm:$0xff] 0.0
    %23 = vst [vmem:[#allocation2 + $0x40] sm:$0xff] 0.0
    %24 = vst [vmem:[#allocation2 + $0x48] sm:$0xff] 0.0
    %25 = vst [vmem:[#allocation2 + $0x50] sm:$0xff] 0.0
    %26 = vst [vmem:[#allocation2 + $0x58] sm:$0xff] 0.0
    %27 = vst [vmem:[#allocation2 + $0x60] sm:$0xff] 0.0
    %28 = vst [vmem:[#allocation2 + $0x68] sm:$0xff] 0.0
    %29 = vst [vmem:[#allocation2 + $0x70] sm:$0xff] 0.0
    %30 = vst [vmem:[#allocation2 + $0x78] sm:$0xff] 0.0
  $region13: #{unet_block_forward.18} parent=0 // pred_fallthru
    _
  %v31 = vld [vmem:[%s0] sm:$0xf]
  %v32 = vld [vmem:[%s0 + $0x4] sm:$0xf]
  %v33 = vld [vmem:[%s0 + $0x8] sm:$0xf]
  %v34 = vld [vmem:[%s0 + $0xc] sm:$0xf]
  %v35 = vld [vmem:[%s0 + $0x10] sm:$0xf]
  %v36 = vld [vmem:[%s0 + $0x14] sm:$0xf]
  %v37 = vld [vmem:[%s0 + $0x18] sm:$0xf]
  %v38 = vld [vmem:[%s0 + $0x1c] sm:$0xf]
  %v39 = vld [vmem:[%s0 + $0x20] sm:$0xf]
  %v40 = vld [vmem:[%s0 + $0x24] sm:$0xf]
  %v41 = vld [vmem:[%s0 + $0x28] sm:$0xf]
  %v42 = vld [vmem:[%s0 + $0x2c] sm:$0xf]
  %v43 = vld [vmem:[%s0 + $0x30] sm:$0xf]
  %v44 = vld [vmem:[%s0 + $0x34] sm:$0xf]
  %v45 = vld [vmem:[%s0 + $0x38] sm:$0xf]
  %v46 = vld [vmem:[%s0 + $0x3c] sm:$0xf]
  %v47 = vld [vmem:[#allocation2] sm:$0xff]
  %v48 = vld [vmem:[#allocation2 + $0x8] sm:$0xff]
  %v49 = vld [vmem:[#allocation2 + $0x10] sm:$0xff]
  %v50 = vld [vmem:[#allocation2 + $0x18] sm:$0xff]
  %v51 = vld [vmem:[#allocation2 + $0x20] sm:$0xff]
  %v52 = vld [vmem:[#allocation2 + $0x28] sm:$0xff]
  %v53 = vld [vmem:[#allocation2 + $0x30] sm:$0xff]
  %v54 = vld [vmem:[#allocation2 + $0x38] sm:$0xff]
  %v55 = vld [vmem:[#allocation2 + $0x40] sm:$0xff]
  %v56 = vld [vmem:[#allocation2 + $0x48] sm:$0xff]
  %v57 = vld [vmem:[#allocation2 + $0x50] sm:$0xff]
  %v58 = vld [vmem:[#allocation2 + $0x58] sm:$0xff]
  %v59 = vld [vmem:[#allocation2 + $0x60] sm:$0xff]
  %v60 = vld [vmem:[#allocation2 + $0x68] sm:$0xff]
  %v61 = vld [vmem:[#allocation2 + $0x70] sm:$0xff]
  %v62 = vld [vmem:[#allocation2 + $0x78] sm:$0xff]
  %v63 = vld [vmem:[%s1] sm:$0xf]
  %v64 = vld [vmem:[%s1 + $0x4] sm:$0xf]
  %v65 = vld [vmem:[%s1 + $0x8] sm:$0xf]
  %v66 = vld [vmem:[%s1 + $0xc] sm:$0xf]
  %v67 = vld [vmem:[%s1 + $0x10] sm:$0xf]
  %v68 = vld [vmem:[%s1 + $0x14] sm:$0xf]
  %v69 = vld [vmem:[%s1 + $0x18] sm:$0xf]
  %v70 = vld [vmem:[%s1 + $0x1c] sm:$0xf]
  %v71 = vld [vmem:[%s1 + $0x20] sm:$0xf]
  %v72 = vld [vmem:[%s1 + $0x24] sm:$0xf]
  %v73 = vld [vmem:[%s1 + $0x28] sm:$0xf]
  %v74 = vld [vmem:[%s1 + $0x2c] sm:$0xf]
  %v75 = vld [vmem:[%s1 + $0x30] sm:$0xf]
  %v76 = vld [vmem:[%s1 + $0x34] sm:$0xf]
  %v77 = vld [vmem:[%s1 + $0x38] sm:$0xf]
  %v78 = vld [vmem:[%s1 + $0x3c] sm:$0xf]
  %v95 = vunpack.c.l.b16 %v31
  %v96 = vunpack.c.l.b16 %v32
  %v97 = vunpack.c.l.b16 %v33
  %v98 = vunpack.c.l.b16 %v34
  %v99 = vunpack.c.l.b16 %v35
  %v100 = vunpack.c.l.b16 %v36
  %v101 = vunpack.c.l.b16 %v37
  %v102 = vunpack.c.l.b16 %v38
  %v103 = vunpack.c.l.b16 %v39
  %v104 = vunpack.c.l.b16 %v40
  %v105 = vunpack.c.l.b16 %v41
  %v106 = vunpack.c.l.b16 %v42
  %v107 = vunpack.c.l.b16 %v43
  %v108 = vunpack.c.l.b16 %v44
  %v109 = vunpack.c.l.b16 %v45
  %v110 = vunpack.c.l.b16 %v46
  %v111 = vpack.c.b16 %v96, %v95
  %v112 = vpack.c.b16 %v98, %v97
  %v113 = vpack.c.b16 %v100, %v99
  %v114 = vpack.c.b16 %v102, %v101
  %v115 = vpack.c.b16 %v104, %v103
  %v116 = vpack.c.b16 %v106, %v105
  %v117 = vpack.c.b16 %v108, %v107
  %v118 = vpack.c.b16 %v110, %v109
  %v143 = vunpack.c.l.b16 %v63
  %v144 = vunpack.c.l.b16 %v64
  %v145 = vunpack.c.l.b16 %v65
  %v146 = vunpack.c.l.b16 %v66
  %v147 = vunpack.c.l.b16 %v67
  %v148 = vunpack.c.l.b16 %v68
  %v149 = vunpack.c.l.b16 %v69
  %v150 = vunpack.c.l.b16 %v70
  %v151 = vunpack.c.l.b16 %v71
  %v152 = vunpack.c.l.b16 %v72
  %v153 = vunpack.c.l.b16 %v73
  %v154 = vunpack.c.l.b16 %v74
  %v155 = vunpack.c.l.b16 %v75
  %v156 = vunpack.c.l.b16 %v76
  %v157 = vunpack.c.l.b16 %v77
  %v158 = vunpack.c.l.b16 %v78
  %v159 = vpack.c.b16 %v144, %v143
  %v160 = vpack.c.b16 %v146, %v145
  %v161 = vpack.c.b16 %v148, %v147
  %v162 = vpack.c.b16 %v150, %v149
  %v163 = vpack.c.b16 %v152, %v151
  %v164 = vpack.c.b16 %v154, %v153
  %v165 = vpack.c.b16 %v156, %v155
  %v166 = vpack.c.b16 %v158, %v157
  %175 = vmatpush.bf16.msra.mxu0 %v166
  %176 = vmatpush.bf16.msra.mxu0 %v165
  %177 = vmatpush.bf16.msra.mxu0 %v164
  %178 = vmatpush.bf16.msra.mxu0 %v163
  %179 = vmatpush.bf16.msra.mxu0 %v162
  %180 = vmatpush.bf16.msra.mxu0 %v161
  %181 = vmatpush.bf16.msra.mxu0 %v160
  %182 = vmatpush.bf16.msra.mxu0 %v159
  %183 = vmatmul.bf16.gmra.mxu0 %v111
  %v184 = vpop.f32.mrf.mxu0
  %v185 = vadd.f32 0.0, %v184
  %v186 = vpop.f32.mrf.mxu0
  %v187 = vadd.f32 0.0, %v186
  %188 = vmatmul.bf16.gmra.mxu0 %v112
  %v189 = vpop.f32.mrf.mxu0
  %v190 = vadd.f32 0.0, %v189
  %v191 = vpop.f32.mrf.mxu0
  %v192 = vadd.f32 0.0, %v191
  %193 = vmatmul.bf16.gmra.mxu0 %v113
  %v194 = vpop.f32.mrf.mxu0
  %v195 = vadd.f32 0.0, %v194
  %v196 = vpop.f32.mrf.mxu0
  %v197 = vadd.f32 0.0, %v196
  %198 = vmatmul.bf16.gmra.mxu0 %v114
  %v199 = vpop.f32.mrf.mxu0
  %v200 = vadd.f32 0.0, %v199
  %v201 = vpop.f32.mrf.mxu0
  %v202 = vadd.f32 0.0, %v201
  %203 = vmatmul.bf16.gmra.mxu0 %v115
  %v204 = vpop.f32.mrf.mxu0
  %v205 = vadd.f32 0.0, %v204
  %v206 = vpop.f32.mrf.mxu0
  %v207 = vadd.f32 0.0, %v206
  %208 = vmatmul.bf16.gmra.mxu0 %v116
  %v209 = vpop.f32.mrf.mxu0
  %v210 = vadd.f32 0.0, %v209
  %v211 = vpop.f32.mrf.mxu0
  %v212 = vadd.f32 0.0, %v211
  %213 = vmatmul.bf16.gmra.mxu0 %v117
  %v214 = vpop.f32.mrf.mxu0
  %v215 = vadd.f32 0.0, %v214
  %v216 = vpop.f32.mrf.mxu0
  %v217 = vadd.f32 0.0, %v216
  %218 = vmatmul.bf16.gmra.mxu0 %v118
  %v219 = vpop.f32.mrf.mxu0
  %v220 = vadd.f32 0.0, %v219
  %v221 = vpop.f32.mrf.mxu0
  %v222 = vadd.f32 0.0, %v221
  %223 = vdwg.mxu0
  %v224 = vadd.f32 %v47, %v185
  %v225 = vadd.f32 %v48, %v187
  %v226 = vadd.f32 %v49, %v190
  %v227 = vadd.f32 %v50, %v192
  %v228 = vadd.f32 %v51, %v195
  %v229 = vadd.f32 %v52, %v197
  %v230 = vadd.f32 %v53, %v200
  %v231 = vadd.f32 %v54, %v202
  %v232 = vadd.f32 %v55, %v205
  %v233 = vadd.f32 %v56, %v207
  %v234 = vadd.f32 %v57, %v210
  %v235 = vadd.f32 %v58, %v212
  %v236 = vadd.f32 %v59, %v215
  %v237 = vadd.f32 %v60, %v217
  %v238 = vadd.f32 %v61, %v220
  %v239 = vadd.f32 %v62, %v222
  %240 = vst [vmem:[#allocation2] sm:$0xff] %v224
  %241 = vst [vmem:[#allocation2 + $0x8] sm:$0xff] %v225
  %242 = vst [vmem:[#allocation2 + $0x10] sm:$0xff] %v226
  %243 = vst [vmem:[#allocation2 + $0x18] sm:$0xff] %v227
  %244 = vst [vmem:[#allocation2 + $0x20] sm:$0xff] %v228
  %245 = vst [vmem:[#allocation2 + $0x28] sm:$0xff] %v229
  %246 = vst [vmem:[#allocation2 + $0x30] sm:$0xff] %v230
  %247 = vst [vmem:[#allocation2 + $0x38] sm:$0xff] %v231
  %248 = vst [vmem:[#allocation2 + $0x40] sm:$0xff] %v232
  %249 = vst [vmem:[#allocation2 + $0x48] sm:$0xff] %v233
  %250 = vst [vmem:[#allocation2 + $0x50] sm:$0xff] %v234
  %251 = vst [vmem:[#allocation2 + $0x58] sm:$0xff] %v235
  %252 = vst [vmem:[#allocation2 + $0x60] sm:$0xff] %v236
  %253 = vst [vmem:[#allocation2 + $0x68] sm:$0xff] %v237
  %254 = vst [vmem:[#allocation2 + $0x70] sm:$0xff] %v238
  %255 = vst [vmem:[#allocation2 + $0x78] sm:$0xff] %v239
  // Predicated region
  $region14: #{unet_block_forward.18} parent=0 // pred_check
    %p256 = pneg %p11
  $region15: #{unet_block_forward.18} parent=0 // pred_check_branch
    %258 = sbr.rel (%p256) target = $region17
  $region16: #{unet_block_forward.18} parent=0 // pred_region
    %v259 = vld [vmem:[#allocation2] sm:$0xff]
    %v260 = vld [vmem:[#allocation2 + $0x8] sm:$0xff]
    %v261 = vld [vmem:[#allocation2 + $0x10] sm:$0xff]
    %v262 = vld [vmem:[#allocation2 + $0x18] sm:$0xff]
    %v263 = vld [vmem:[#allocation2 + $0x20] sm:$0xff]
    %v264 = vld [vmem:[#allocation2 + $0x28] sm:$0xff]
    %v265 = vld [vmem:[#allocation2 + $0x30] sm:$0xff]
    %v266 = vld [vmem:[#allocation2 + $0x38] sm:$0xff]
    %v267 = vld [vmem:[#allocation2 + $0x40] sm:$0xff]
    %v268 = vld [vmem:[#allocation2 + $0x48] sm:$0xff]
    %v269 = vld [vmem:[#allocation2 + $0x50] sm:$0xff]
    %v270 = vld [vmem:[#allocation2 + $0x58] sm:$0xff]
    %v271 = vld [vmem:[#allocation2 + $0x60] sm:$0xff]
    %v272 = vld [vmem:[#allocation2 + $0x68] sm:$0xff]
    %v273 = vld [vmem:[#allocation2 + $0x70] sm:$0xff]
    %v274 = vld [vmem:[#allocation2 + $0x78] sm:$0xff]
    %v275 = vpack.c.bf16 %v259, %v259
    %v276 = vpack.c.bf16 %v260, %v260
    %v277 = vpack.c.bf16 %v261, %v261
    %v278 = vpack.c.bf16 %v262, %v262
    %v279 = vpack.c.bf16 %v263, %v263
    %v280 = vpack.c.bf16 %v264, %v264
    %v281 = vpack.c.bf16 %v265, %v265
    %v282 = vpack.c.bf16 %v266, %v266
    %v283 = vpack.c.bf16 %v267, %v267
    %v284 = vpack.c.bf16 %v268, %v268
    %v285 = vpack.c.bf16 %v269, %v269
    %v286 = vpack.c.bf16 %v270, %v270
    %v287 = vpack.c.bf16 %v271, %v271
    %v288 = vpack.c.bf16 %v272, %v272
    %v289 = vpack.c.bf16 %v273, %v273
    %v290 = vpack.c.bf16 %v274, %v274
    %291 = vst [vmem:[%s2] sm:$0xf] %v275
    %292 = vst [vmem:[%s2 + $0x4] sm:$0xf] %v276
    %293 = vst [vmem:[%s2 + $0x8] sm:$0xf] %v277
    %294 = vst [vmem:[%s2 + $0xc] sm:$0xf] %v278
    %295 = vst [vmem:[%s2 + $0x10] sm:$0xf] %v279
    %296 = vst [vmem:[%s2 + $0x14] sm:$0xf] %v280
    %297 = vst [vmem:[%s2 + $0x18] sm:$0xf] %v281
    %298 = vst [vmem:[%s2 + $0x1c] sm:$0xf] %v282
    %299 = vst [vmem:[%s2 + $0x20] sm:$0xf] %v283
    %300 = vst [vmem:[%s2 + $0x24] sm:$0xf] %v284
    %301 = vst [vmem:[%s2 + $0x28] sm:$0xf] %v285
    %302 = vst [vmem:[%s2 + $0x2c] sm:$0xf] %v286
    %303 = vst [vmem:[%s2 + $0x30] sm:$0xf] %v287
    %304 = vst [vmem:[%s2 + $0x34] sm:$0xf] %v288
    %305 = vst [vmem:[%s2 + $0x38] sm:$0xf] %v289
    %306 = vst [vmem:[%s2 + $0x3c] sm:$0xf] %v290
  $region17: #{unet_block_forward.18} parent=0 // pred_fallthru
    _
  // Predicated region
  $region18: #{unet_block_forward.18} parent=0 // pred_check
    _
  $region19: #{unet_block_forward.18} parent=0 // pred_check_branch
    %308 = sbr.rel (0) target = $region21
  $region20: #{unet_block_forward.18} parent=0 // pred_region
    _
  $region21: #{unet_block_forward.18} parent=0 // pred_fallthru
    _
  // Predicated region
  $region22: #{unet_block_forward.18} parent=0 // pred_check
    _
  $region23: #{unet_block_forward.18} parent=0 // pred_check_branch
    %310 = sbr.rel (0) target = $region25
  $region24: #{unet_block_forward.18} parent=0 // pred_region
    _
  $region25: #{unet_block_forward.18} parent=0 // pred_fallthru
    _

// kernel: unet_block_forward.20
$region0: #{unet_block_forward.20}
  #allocation0 [shape = 'u32[]', space=smem, size = 0x4, offset = 0x4, fixed_abs, tag = 'smem constant byte address 0x4 - core index']
  #allocation1 [shape = 'u32[72,128]{1,0:T(1,128)}', space=vmem, size = 0x9000, scoped, tag = 'internal scratch']
  %s0 = inlined_call_operand.vmem [shape: bf16[32,128], index: 0, kind: input, shape index: {}]
  %s1 = inlined_call_operand.vmem [shape: f32[8,128], index: 1, kind: input, shape index: {}]
  %s2 = inlined_call_operand.vmem [shape: bf16[32,128], index: 2, kind: output, shape index: {}]
  %s3 = sld [smem:[#allocation0]]
  $region18: #{unet_block_forward.20} parent=0
    _
  %s5 = ssub.s32 1, %s3
  %s6 = scalar_select 0, %s5, %s3
  // Predicated region
  $region2: #{unet_block_forward.20} parent=0 // pred_check
    _
  $region3: #{unet_block_forward.20} parent=0 // pred_check_branch
    %8 = sbr.rel (0) target = $region5
  $region4: #{unet_block_forward.20} parent=0 // pred_region
    _
  $region5: #{unet_block_forward.20} parent=0 // pred_fallthru
    _
  // Predicated region
  $region6: #{unet_block_forward.20} parent=0 // pred_check
    _
  $region7: #{unet_block_forward.20} parent=0 // pred_check_branch
    %10 = sbr.rel (0) target = $region9
  $region8: #{unet_block_forward.20} parent=0 // pred_region
    _
  $region9: #{unet_block_forward.20} parent=0 // pred_fallthru
    _
  %v11 = vld [vmem:[%s0] sm:$0xf]
  %v12 = vld [vmem:[%s0 + $0x4] sm:$0xf]
  %v13 = vld [vmem:[%s0 + $0x8] sm:$0xf]
  %v14 = vld [vmem:[%s0 + $0xc] sm:$0xf]
  %v15 = vunpack.c.l.bf16 %v11
  %v16 = vunpack.c.l.bf16 %v12
  %v17 = vunpack.c.l.bf16 %v13
  %v18 = vunpack.c.l.bf16 %v14
  %v19 = vld [vmem:[%s1] sm:$0x1]
  %v20 = vperm.slane %v19, 0
  %v21 = vmul.f32 %v15, %v20
  %v22 = vmul.f32 %v16, %v20
  %v23 = vmul.f32 %v17, %v20
  %v24 = vmul.f32 %v18, %v20
  %v25 = vld [vmem:[%s1 + $0x1] sm:$0x1]
  %v26 = vperm.slane %v25, 0
  %v27 = vadd.f32 %v21, %v26
  %v28 = vadd.f32 %v22, %v26
  %v29 = vadd.f32 %v23, %v26
  %v30 = vadd.f32 %v24, %v26
  %v31 = vpack.c.bf16 %v27, %v27
  %v32 = vpack.c.bf16 %v28, %v28
  %v33 = vpack.c.bf16 %v29, %v29
  %v34 = vpack.c.bf16 %v30, %v30
  %35 = vst [vmem:[%s2] sm:$0xf] %v31
  %36 = vst [vmem:[%s2 + $0x4] sm:$0xf] %v32
  %37 = vst [vmem:[%s2 + $0x8] sm:$0xf] %v33
  %38 = vst [vmem:[%s2 + $0xc] sm:$0xf] %v34
  // Predicated region
  $region10: #{unet_block_forward.20} parent=0 // pred_check
    _
  $region11: #{unet_block_forward.20} parent=0 // pred_check_branch
    %40 = sbr.rel (0) target = $region13
  $region12: #{unet_block_forward.20} parent=0 // pred_region
    _
  $region13: #{unet_block_forward.20} parent=0 // pred_fallthru
    _
  // Predicated region
  $region14: #{unet_block_forward.20} parent=0 // pred_check
    _
  $region15: #{unet_block_forward.20} parent=0 // pred_check_branch
    %42 = sbr.rel (0) target = $region17
  $region16: #{unet_block_forward.20} parent=0 // pred_region
    _
  $region17: #{unet_block_forward.20} parent=0 // pred_fallthru
    _

// kernel: unet_block_forward.19
$region0: #{unet_block_forward.19}
  #allocation0 [shape = 'u32[]', space=smem, size = 0x4, offset = 0x4, fixed_abs, tag = 'smem constant byte address 0x4 - core index']
  #allocation1 [shape = 'u32[72,128]{1,0:T(1,128)}', space=vmem, size = 0x9000, scoped, tag = 'internal scratch']
  #allocation2 [shape = 'f32[32,128]{1,0:T(8,128)}', space=vmem, size = 0x4000, scoped, tag = 'scratch operand']
  %s0 = inlined_call_operand.vmem [shape: bf16[32,128], index: 0, kind: input, shape index: {}]
  %s1 = inlined_call_operand.vmem [shape: bf16[128,128], index: 1, kind: input, shape index: {}]
  %s2 = inlined_call_operand.vmem [shape: bf16[32,128], index: 2, kind: output, shape index: {0}]
  %s3 = inlined_call_operand.vmem [shape: f32[1,8,128], index: 3, kind: output, shape index: {1}]
  %4 = xla_tuple %s2, %s3
  %s5 = sld [smem:[#allocation0]]
  $region34: #{unet_block_forward.19} parent=0
    _
  %s7 = ssub.s32 1, %s5
  %s8 = scalar_select 0, %s7, %s5
  // Predicated region
  $region2: #{unet_block_forward.19} parent=0 // pred_check
    _
  $region3: #{unet_block_forward.19} parent=0 // pred_check_branch
    %10 = sbr.rel (0) target = $region5
  $region4: #{unet_block_forward.19} parent=0 // pred_region
    _
  $region5: #{unet_block_forward.19} parent=0 // pred_fallthru
    _
  // Predicated region
  $region6: #{unet_block_forward.19} parent=0 // pred_check
    _
  $region7: #{unet_block_forward.19} parent=0 // pred_check_branch
    %12 = sbr.rel (0) target = $region9
  $region8: #{unet_block_forward.19} parent=0 // pred_region
    _
  $region9: #{unet_block_forward.19} parent=0 // pred_fallthru
    _
  %p13 = scmp.eq.s32.totalorder 0, 0
  // Predicated region
  $region10: #{unet_block_forward.19} parent=0 // pred_check
    %p14 = pneg %p13
  $region11: #{unet_block_forward.19} parent=0 // pred_check_branch
    %16 = sbr.rel (%p14) target = $region13
  $region12: #{unet_block_forward.19} parent=0 // pred_region
    %17 = vst [vmem:[#allocation2] sm:$0xff] 0.0
    %18 = vst [vmem:[#allocation2 + $0x8] sm:$0xff] 0.0
    %19 = vst [vmem:[#allocation2 + $0x10] sm:$0xff] 0.0
    %20 = vst [vmem:[#allocation2 + $0x18] sm:$0xff] 0.0
  $region13: #{unet_block_forward.19} parent=0 // pred_fallthru
    _
  %v21 = vld [vmem:[%s0] sm:$0xf]
  %v22 = vld [vmem:[%s0 + $0x4] sm:$0xf]
  %v23 = vld [vmem:[%s0 + $0x8] sm:$0xf]
  %v24 = vld [vmem:[%s0 + $0xc] sm:$0xf]
  %v25 = vunpack.c.l.bf16 %v21
  %v26 = vunpack.c.l.bf16 %v22
  %v27 = vunpack.c.l.bf16 %v23
  %v28 = vunpack.c.l.bf16 %v24
  %vm29 = vcmp.ge.f32.partialorder %v25, 0.0
  %vm30 = vcmp.ge.f32.partialorder %v26, 0.0
  %vm31 = vcmp.ge.f32.partialorder %v27, 0.0
  %vm32 = vcmp.ge.f32.partialorder %v28, 0.0
  %v33 = vmul.f32 %v25, 0.20019531
  %v34 = vmul.f32 %v26, 0.20019531
  %v35 = vmul.f32 %v27, 0.20019531
  %v36 = vmul.f32 %v28, 0.20019531
  %v37 = vpack.c.bf16 %v33, %v33
  %v38 = vpack.c.bf16 %v34, %v34
  %v39 = vpack.c.bf16 %v35, %v35
  %v40 = vpack.c.bf16 %v36, %v36
  %vm41 = vmpackc.low %vm29, %vm29
  %vm42 = vmpackc.low %vm30, %vm30
  %vm43 = vmpackc.low %vm31, %vm31
  %vm44 = vmpackc.low %vm32, %vm32
  %v45 = vsel %vm41, %v21, %v37
  %v46 = vsel %vm42, %v22, %v38
  %v47 = vsel %vm43, %v23, %v39
  %v48 = vsel %vm44, %v24, %v40
  %v49 = vld [vmem:[#allocation2] sm:$0xff]
  %v50 = vld [vmem:[#allocation2 + $0x8] sm:$0xff]
  %v51 = vld [vmem:[#allocation2 + $0x10] sm:$0xff]
  %v52 = vld [vmem:[#allocation2 + $0x18] sm:$0xff]
  %v53 = vld [vmem:[%s1] sm:$0xf]
  %v54 = vld [vmem:[%s1 + $0x4] sm:$0xf]
  %v55 = vld [vmem:[%s1 + $0x8] sm:$0xf]
  %v56 = vld [vmem:[%s1 + $0xc] sm:$0xf]
  %v57 = vld [vmem:[%s1 + $0x10] sm:$0xf]
  %v58 = vld [vmem:[%s1 + $0x14] sm:$0xf]
  %v59 = vld [vmem:[%s1 + $0x18] sm:$0xf]
  %v60 = vld [vmem:[%s1 + $0x1c] sm:$0xf]
  %v61 = vld [vmem:[%s1 + $0x20] sm:$0xf]
  %v62 = vld [vmem:[%s1 + $0x24] sm:$0xf]
  %v63 = vld [vmem:[%s1 + $0x28] sm:$0xf]
  %v64 = vld [vmem:[%s1 + $0x2c] sm:$0xf]
  %v65 = vld [vmem:[%s1 + $0x30] sm:$0xf]
  %v66 = vld [vmem:[%s1 + $0x34] sm:$0xf]
  %v67 = vld [vmem:[%s1 + $0x38] sm:$0xf]
  %v68 = vld [vmem:[%s1 + $0x3c] sm:$0xf]
  %v73 = vunpack.c.l.b16 %v45
  %v74 = vunpack.c.l.b16 %v46
  %v75 = vunpack.c.l.b16 %v47
  %v76 = vunpack.c.l.b16 %v48
  %v77 = vpack.c.b16 %v74, %v73
  %v78 = vpack.c.b16 %v76, %v75
  %v97 = vunpack.c.l.b16 %v53
  %v98 = vunpack.c.l.b16 %v54
  %v99 = vunpack.c.l.b16 %v55
  %v100 = vunpack.c.l.b16 %v56
  %v101 = vunpack.c.l.b16 %v57
  %v102 = vunpack.c.l.b16 %v58
  %v103 = vunpack.c.l.b16 %v59
  %v104 = vunpack.c.l.b16 %v60
  %v105 = vunpack.c.l.b16 %v61
  %v106 = vunpack.c.l.b16 %v62
  %v107 = vunpack.c.l.b16 %v63
  %v108 = vunpack.c.l.b16 %v64
  %v109 = vunpack.c.l.b16 %v65
  %v110 = vunpack.c.l.b16 %v66
  %v111 = vunpack.c.l.b16 %v67
  %v112 = vunpack.c.l.b16 %v68
  %v113 = vpack.c.b16 %v98, %v97
  %v114 = vpack.c.b16 %v100, %v99
  %v115 = vpack.c.b16 %v102, %v101
  %v116 = vpack.c.b16 %v104, %v103
  %v117 = vpack.c.b16 %v106, %v105
  %v118 = vpack.c.b16 %v108, %v107
  %v119 = vpack.c.b16 %v110, %v109
  %v120 = vpack.c.b16 %v112, %v111
  %129 = vmatpush.bf16.msra.mxu0 %v120
  %130 = vmatpush.bf16.msra.mxu0 %v119
  %131 = vmatpush.bf16.msra.mxu0 %v118
  %132 = vmatpush.bf16.msra.mxu0 %v117
  %133 = vmatpush.bf16.msra.mxu0 %v116
  %134 = vmatpush.bf16.msra.mxu0 %v115
  %135 = vmatpush.bf16.msra.mxu0 %v114
  %136 = vmatpush.bf16.msra.mxu0 %v113
  %137 = vmatmul.bf16.gmra.mxu0 %v77
  %v138 = vpop.f32.mrf.mxu0
  %v139 = vadd.f32 0.0, %v138
  %v140 = vpop.f32.mrf.mxu0
  %v141 = vadd.f32 0.0, %v140
  %142 = vmatmul.bf16.gmra.mxu0 %v78
  %v143 = vpop.f32.mrf.mxu0
  %v144 = vadd.f32 0.0, %v143
  %v145 = vpop.f32.mrf.mxu0
  %v146 = vadd.f32 0.0, %v145
  %147 = vdwg.mxu0
  %v148 = vadd.f32 %v49, %v139
  %v149 = vadd.f32 %v50, %v141
  %v150 = vadd.f32 %v51, %v144
  %v151 = vadd.f32 %v52, %v146
  %152 = vst [vmem:[#allocation2] sm:$0xff] %v148
  %153 = vst [vmem:[#allocation2 + $0x8] sm:$0xff] %v149
  %154 = vst [vmem:[#allocation2 + $0x10] sm:$0xff] %v150
  %155 = vst [vmem:[#allocation2 + $0x18] sm:$0xff] %v151
  // Predicated region
  $region14: #{unet_block_forward.19} parent=0 // pred_check
    %p156 = pneg %p13
  $region15: #{unet_block_forward.19} parent=0 // pred_check_branch
    %158 = sbr.rel (%p156) target = $region17
  $region16: #{unet_block_forward.19} parent=0 // pred_region
    %v159 = vld [vmem:[#allocation2] sm:$0xff]
    %v160 = vld [vmem:[#allocation2 + $0x8] sm:$0xff]
    %v161 = vld [vmem:[#allocation2 + $0x10] sm:$0xff]
    %v162 = vld [vmem:[#allocation2 + $0x18] sm:$0xff]
    %v163 = vadd.f32 %v159, %v160
    %v164 = vadd.f32 %v163, %v161
    %v165 = vadd.f32 %v164, %v162
    %v166 = vrot.slane %v165, 4
    %v167 = vadd.f32 %v165, %v166
    %v168 = vrot.slane %v167, 2
    %v169 = vadd.f32 %v167, %v168
    %v170 = vrot.slane %v169, 1
    %v171 = vadd.f32 %v169, %v170
    %v172 = vmul.f32 %v159, %v159
    %v173 = vmul.f32 %v160, %v160
    %v174 = vmul.f32 %v161, %v161
    %v175 = vmul.f32 %v162, %v162
    %v176 = vadd.f32 %v172, %v173
    %v177 = vadd.f32 %v176, %v174
    %v178 = vadd.f32 %v177, %v175
    %v179 = vrot.slane %v178, 4
    %v180 = vadd.f32 %v178, %v179
    %v181 = vrot.slane %v180, 2
    %v182 = vadd.f32 %v180, %v181
    %v183 = vrot.slane %v182, 1
    %v184 = vadd.f32 %v182, %v183
    %vm185 = vcmask 1040384
    %v186 = vsel %vm185, %v171, %v184
    %vm187 = vcmask 1041408
    %v188 = vsel %vm187, %v186, 0.0
    %vm189 = vcmask 1042432
    %v190 = vsel %vm189, %v188, 0.0
    %vm191 = vcmask 1043456
    %v192 = vsel %vm191, %v190, 0.0
    %vm193 = vcmask 1044480
    %v194 = vsel %vm193, %v192, 0.0
    %vm195 = vcmask 1045504
    %v196 = vsel %vm195, %v194, 0.0
    %vm197 = vcmask 1046528
    %v198 = vsel %vm197, %v196, 0.0
    %199 = vst [vmem:[%s3] sm:$0xff] %v198
    %v200 = vpack.c.bf16 %v159, %v159
    %v201 = vpack.c.bf16 %v160, %v160
    %v202 = vpack.c.bf16 %v161, %v161
    %v203 = vpack.c.bf16 %v162, %v162
    %204 = vst [vmem:[%s2] sm:$0xf] %v200
    %205 = vst [vmem:[%s2 + $0x4] sm:$0xf] %v201
    %206 = vst [vmem:[%s2 + $0x8] sm:$0xf] %v202
    %207 = vst [vmem:[%s2 + $0xc] sm:$0xf] %v203
  $region17: #{unet_block_forward.19} parent=0 // pred_fallthru
    _
  // Predicated region
  $region18: #{unet_block_forward.19} parent=0 // pred_check
    _
  $region19: #{unet_block_forward.19} parent=0 // pred_check_branch
    %209 = sbr.rel (0) target = $region21
  $region20: #{unet_block_forward.19} parent=0 // pred_region
    _
  $region21: #{unet_block_forward.19} parent=0 // pred_fallthru
    _
  // Predicated region
  $region22: #{unet_block_forward.19} parent=0 // pred_check
    _
  $region23: #{unet_block_forward.19} parent=0 // pred_check_branch
    %211 = sbr.rel (0) target = $region25
  $region24: #{unet_block_forward.19} parent=0 // pred_region
    _
  $region25: #{unet_block_forward.19} parent=0 // pred_fallthru
    _
  // Predicated region
  $region26: #{unet_block_forward.19} parent=0 // pred_check
    _
  $region27: #{unet_block_forward.19} parent=0 // pred_check_branch
    %213 = sbr.rel (0) target = $region29
  $region28: #{unet_block_forward.19} parent=0 // pred_region
    _
  $region29: #{unet_block_forward.19} parent=0 // pred_fallthru
    _
  // Predicated region
  $region30: #{unet_block_forward.19} parent=0 // pred_check
    _
  $region31: #{unet_block_forward.19} parent=0 // pred_check_branch
    %215 = sbr.rel (0) target = $region33
  $region32: #{unet_block_forward.19} parent=0 // pred_region
    _
  $region33: #{unet_block_forward.19} parent=0 // pred_fallthru
    _

// kernel: unet_block_forward.21
$region0: #{unet_block_forward.21}
  #allocation0 [shape = 'u32[]', space=smem, size = 0x4, offset = 0x4, fixed_abs, tag = 'smem constant byte address 0x4 - core index']
  #allocation1 [shape = 'u32[72,128]{1,0:T(1,128)}', space=vmem, size = 0x9000, scoped, tag = 'internal scratch']
  #allocation2 [shape = 'f32[8,128]{1,0:T(8,128)}', space=vmem, size = 0x1000, scoped, tag = 'scratch operand']
  %s0 = inlined_call_operand.vmem [shape: bf16[8,256], index: 0, kind: input, shape index: {}]
  %s1 = inlined_call_operand.vmem [shape: bf16[256,128], index: 1, kind: input, shape index: {}]
  %s2 = inlined_call_operand.vmem [shape: bf16[8,128], index: 2, kind: output, shape index: {}]
  %s3 = sld [smem:[#allocation0]]
  $region26: #{unet_block_forward.21} parent=0
    _
  %s5 = ssub.s32 1, %s3
  %s6 = scalar_select 0, %s5, %s3
  // Predicated region
  $region2: #{unet_block_forward.21} parent=0 // pred_check
    _
  $region3: #{unet_block_forward.21} parent=0 // pred_check_branch
    %8 = sbr.rel (0) target = $region5
  $region4: #{unet_block_forward.21} parent=0 // pred_region
    _
  $region5: #{unet_block_forward.21} parent=0 // pred_fallthru
    _
  // Predicated region
  $region6: #{unet_block_forward.21} parent=0 // pred_check
    _
  $region7: #{unet_block_forward.21} parent=0 // pred_check_branch
    %10 = sbr.rel (0) target = $region9
  $region8: #{unet_block_forward.21} parent=0 // pred_region
    _
  $region9: #{unet_block_forward.21} parent=0 // pred_fallthru
    _
  %p11 = scmp.eq.s32.totalorder 0, 0
  // Predicated region
  $region10: #{unet_block_forward.21} parent=0 // pred_check
    %p12 = pneg %p11
  $region11: #{unet_block_forward.21} parent=0 // pred_check_branch
    %14 = sbr.rel (%p12) target = $region13
  $region12: #{unet_block_forward.21} parent=0 // pred_region
    %15 = vst [vmem:[#allocation2] sm:$0xff] 0.0
  $region13: #{unet_block_forward.21} parent=0 // pred_fallthru
    _
  %v16 = vld [vmem:[%s0] sm:$0xff]
  %v17 = vunpack.c.l.bf16 %v16
  %v18 = vunpack.c.h.bf16 %v16
  %vm19 = vcmp.ge.f32.partialorder %v17, 0.0
  %vm20 = vcmp.ge.f32.partialorder %v18, 0.0
  %v21 = vmul.f32 %v17, 0.20019531
  %v22 = vmul.f32 %v18, 0.20019531
  %v23 = vpack.c.bf16 %v22, %v21
  %vm24 = vmpackc.low %vm20, %vm19
  %v25 = vsel %vm24, %v16, %v23
  %v26 = vld [vmem:[#allocation2] sm:$0xff]
  %v27 = vld [vmem:[%s1] sm:$0xf]
  %v28 = vld [vmem:[%s1 + $0x4] sm:$0xf]
  %v29 = vld [vmem:[%s1 + $0x8] sm:$0xf]
  %v30 = vld [vmem:[%s1 + $0xc] sm:$0xf]
  %v31 = vld [vmem:[%s1 + $0x10] sm:$0xf]
  %v32 = vld [vmem:[%s1 + $0x14] sm:$0xf]
  %v33 = vld [vmem:[%s1 + $0x18] sm:$0xf]
  %v34 = vld [vmem:[%s1 + $0x1c] sm:$0xf]
  %v35 = vld [vmem:[%s1 + $0x20] sm:$0xf]
  %v36 = vld [vmem:[%s1 + $0x24] sm:$0xf]
  %v37 = vld [vmem:[%s1 + $0x28] sm:$0xf]
  %v38 = vld [vmem:[%s1 + $0x2c] sm:$0xf]
  %v39 = vld [vmem:[%s1 + $0x30] sm:$0xf]
  %v40 = vld [vmem:[%s1 + $0x34] sm:$0xf]
  %v41 = vld [vmem:[%s1 + $0x38] sm:$0xf]
  %v42 = vld [vmem:[%s1 + $0x3c] sm:$0xf]
  %v43 = vld [vmem:[%s1 + $0x40] sm:$0xf]
  %v44 = vld [vmem:[%s1 + $0x44] sm:$0xf]
  %v45 = vld [vmem:[%s1 + $0x48] sm:$0xf]
  %v46 = vld [vmem:[%s1 + $0x4c] sm:$0xf]
  %v47 = vld [vmem:[%s1 + $0x50] sm:$0xf]
  %v48 = vld [vmem:[%s1 + $0x54] sm:$0xf]
  %v49 = vld [vmem:[%s1 + $0x58] sm:$0xf]
  %v50 = vld [vmem:[%s1 + $0x5c] sm:$0xf]
  %v51 = vld [vmem:[%s1 + $0x60] sm:$0xf]
  %v52 = vld [vmem:[%s1 + $0x64] sm:$0xf]
  %v53 = vld [vmem:[%s1 + $0x68] sm:$0xf]
  %v54 = vld [vmem:[%s1 + $0x6c] sm:$0xf]
  %v55 = vld [vmem:[%s1 + $0x70] sm:$0xf]
  %v56 = vld [vmem:[%s1 + $0x74] sm:$0xf]
  %v57 = vld [vmem:[%s1 + $0x78] sm:$0xf]
  %v58 = vld [vmem:[%s1 + $0x7c] sm:$0xf]
  %v60 = vunpack.c.l.b16 %v25
  %v61 = vunpack.c.h.b16 %v25
  %v62 = vpack.c.b16 %v60, %v60
  %v63 = vpack.c.b16 %v61, %v61
  %v98 = vunpack.c.l.b16 %v27
  %v99 = vunpack.c.l.b16 %v28
  %v100 = vunpack.c.l.b16 %v29
  %v101 = vunpack.c.l.b16 %v30
  %v102 = vunpack.c.l.b16 %v31
  %v103 = vunpack.c.l.b16 %v32
  %v104 = vunpack.c.l.b16 %v33
  %v105 = vunpack.c.l.b16 %v34
  %v106 = vunpack.c.l.b16 %v35
  %v107 = vunpack.c.l.b16 %v36
  %v108 = vunpack.c.l.b16 %v37
  %v109 = vunpack.c.l.b16 %v38
  %v110 = vunpack.c.l.b16 %v39
  %v111 = vunpack.c.l.b16 %v40
  %v112 = vunpack.c.l.b16 %v41
  %v113 = vunpack.c.l.b16 %v42
  %v114 = vunpack.c.l.b16 %v43
  %v115 = vunpack.c.l.b16 %v44
  %v116 = vunpack.c.l.b16 %v45
  %v117 = vunpack.c.l.b16 %v46
  %v118 = vunpack.c.l.b16 %v47
  %v119 = vunpack.c.l.b16 %v48
  %v120 = vunpack.c.l.b16 %v49
  %v121 = vunpack.c.l.b16 %v50
  %v122 = vunpack.c.l.b16 %v51
  %v123 = vunpack.c.l.b16 %v52
  %v124 = vunpack.c.l.b16 %v53
  %v125 = vunpack.c.l.b16 %v54
  %v126 = vunpack.c.l.b16 %v55
  %v127 = vunpack.c.l.b16 %v56
  %v128 = vunpack.c.l.b16 %v57
  %v129 = vunpack.c.l.b16 %v58
  %v130 = vpack.c.b16 %v99, %v98
  %v131 = vpack.c.b16 %v101, %v100
  %v132 = vpack.c.b16 %v103, %v102
  %v133 = vpack.c.b16 %v105, %v104
  %v134 = vpack.c.b16 %v107, %v106
  %v135 = vpack.c.b16 %v109, %v108
  %v136 = vpack.c.b16 %v111, %v110
  %v137 = vpack.c.b16 %v113, %v112
  %v138 = vpack.c.b16 %v115, %v114
  %v139 = vpack.c.b16 %v117, %v116
  %v140 = vpack.c.b16 %v119, %v118
  %v141 = vpack.c.b16 %v121, %v120
  %v142 = vpack.c.b16 %v123, %v122
  %v143 = vpack.c.b16 %v125, %v124
  %v144 = vpack.c.b16 %v127, %v126
  %v145 = vpack.c.b16 %v129, %v128
  %162 = vmatpush.bf16.msra.mxu0 %v137
  %163 = vmatpush.bf16.msra.mxu0 %v136
  %164 = vmatpush.bf16.msra.mxu0 %v135
  %165 = vmatpush.bf16.msra.mxu0 %v134
  %166 = vmatpush.bf16.msra.mxu0 %v133
  %167 = vmatpush.bf16.msra.mxu0 %v132
  %168 = vmatpush.bf16.msra.mxu0 %v131
  %169 = vmatpush.bf16.msra.mxu0 %v130
  %170 = vmatmul.bf16.gmra.mxu0 %v62
  %v171 = vpop.f32.mrf.mxu0
  %v172 = vadd.f32 0.0, %v171
  %v173 = vpop.f32.mrf.mxu0
  %174 = vdwg.mxu0
  %175 = vmatpush.bf16.msra.mxu0 %v145
  %176 = vmatpush.bf16.msra.mxu0 %v144
  %177 = vmatpush.bf16.msra.mxu0 %v143
  %178 = vmatpush.bf16.msra.mxu0 %v142
  %179 = vmatpush.bf16.msra.mxu0 %v141
  %180 = vmatpush.bf16.msra.mxu0 %v140
  %181 = vmatpush.bf16.msra.mxu0 %v139
  %182 = vmatpush.bf16.msra.mxu0 %v138
  %183 = vmatmul.bf16.gmra.mxu0 %v63
  %v184 = vpop.f32.mrf.mxu0
  %v185 = vadd.f32 %v172, %v184
  %v186 = vpop.f32.mrf.mxu0
  %187 = vdwg.mxu0
  %v188 = vadd.f32 %v26, %v185
  %189 = vst [vmem:[#allocation2] sm:$0xff] %v188
  // Predicated region
  $region14: #{unet_block_forward.21} parent=0 // pred_check
    %p190 = pneg %p11
  $region15: #{unet_block_forward.21} parent=0 // pred_check_branch
    %192 = sbr.rel (%p190) target = $region17
  $region16: #{unet_block_forward.21} parent=0 // pred_region
    %v193 = vld [vmem:[#allocation2] sm:$0xff]
    %v194 = vpack.c.bf16 %v193, %v193
    %195 = vst [vmem:[%s2] sm:$0xf] %v194
  $region17: #{unet_block_forward.21} parent=0 // pred_fallthru
    _
  // Predicated region
  $region18: #{unet_block_forward.21} parent=0 // pred_check
    _
  $region19: #{unet_block_forward.21} parent=0 // pred_check_branch
    %197 = sbr.rel (0) target = $region21
  $region20: #{unet_block_forward.21} parent=0 // pred_region
    _
  $region21: #{unet_block_forward.21} parent=0 // pred_fallthru
    _
  // Predicated region
  $region22: #{unet_block_forward.21} parent=0 // pred_check
    _
  $region23: #{unet_block_forward.21} parent=0 // pred_check_branch
    %199 = sbr.rel (0) target = $region25
  $region24: #{unet_block_forward.21} parent=0 // pred_region
    _
  $region25: #{unet_block_forward.21} parent=0 // pred_fallthru
    _

// kernel: unet_block_forward.22
$region0: #{unet_block_forward.22}
  #allocation0 [shape = 'u32[]', space=smem, size = 0x4, offset = 0x4, fixed_abs, tag = 'smem constant byte address 0x4 - core index']
  #allocation1 [shape = 'u32[72,128]{1,0:T(1,128)}', space=vmem, size = 0x9000, scoped, tag = 'internal scratch']
  #allocation2 [shape = 'f32[8,128]{1,0:T(8,128)}', space=vmem, size = 0x1000, scoped, tag = 'scratch operand']
  %s0 = inlined_call_operand.vmem [shape: bf16[8,128], index: 0, kind: input, shape index: {}]
  %s1 = inlined_call_operand.vmem [shape: bf16[128,128], index: 1, kind: input, shape index: {}]
  %s2 = inlined_call_operand.vmem [shape: bf16[8,128], index: 2, kind: output, shape index: {0}]
  %s3 = inlined_call_operand.vmem [shape: f32[1,8,128], index: 3, kind: output, shape index: {1}]
  %4 = xla_tuple %s2, %s3
  %s5 = sld [smem:[#allocation0]]
  $region34: #{unet_block_forward.22} parent=0
    _
  %s7 = ssub.s32 1, %s5
  %s8 = scalar_select 0, %s7, %s5
  // Predicated region
  $region2: #{unet_block_forward.22} parent=0 // pred_check
    _
  $region3: #{unet_block_forward.22} parent=0 // pred_check_branch
    %10 = sbr.rel (0) target = $region5
  $region4: #{unet_block_forward.22} parent=0 // pred_region
    _
  $region5: #{unet_block_forward.22} parent=0 // pred_fallthru
    _
  // Predicated region
  $region6: #{unet_block_forward.22} parent=0 // pred_check
    _
  $region7: #{unet_block_forward.22} parent=0 // pred_check_branch
    %12 = sbr.rel (0) target = $region9
  $region8: #{unet_block_forward.22} parent=0 // pred_region
    _
  $region9: #{unet_block_forward.22} parent=0 // pred_fallthru
    _
  %p13 = scmp.eq.s32.totalorder 0, 0
  // Predicated region
  $region10: #{unet_block_forward.22} parent=0 // pred_check
    %p14 = pneg %p13
  $region11: #{unet_block_forward.22} parent=0 // pred_check_branch
    %16 = sbr.rel (%p14) target = $region13
  $region12: #{unet_block_forward.22} parent=0 // pred_region
    %17 = vst [vmem:[#allocation2] sm:$0xff] 0.0
  $region13: #{unet_block_forward.22} parent=0 // pred_fallthru
    _
  %v18 = vld [vmem:[%s0] sm:$0xf]
  %v19 = vunpack.c.l.bf16 %v18
  %v20 = vmax.f32 %v19, 0.0
  %v21 = vpack.c.bf16 %v20, %v20
  %v22 = vld [vmem:[#allocation2] sm:$0xff]
  %v23 = vld [vmem:[%s1] sm:$0xf]
  %v24 = vld [vmem:[%s1 + $0x4] sm:$0xf]
  %v25 = vld [vmem:[%s1 + $0x8] sm:$0xf]
  %v26 = vld [vmem:[%s1 + $0xc] sm:$0xf]
  %v27 = vld [vmem:[%s1 + $0x10] sm:$0xf]
  %v28 = vld [vmem:[%s1 + $0x14] sm:$0xf]
  %v29 = vld [vmem:[%s1 + $0x18] sm:$0xf]
  %v30 = vld [vmem:[%s1 + $0x1c] sm:$0xf]
  %v31 = vld [vmem:[%s1 + $0x20] sm:$0xf]
  %v32 = vld [vmem:[%s1 + $0x24] sm:$0xf]
  %v33 = vld [vmem:[%s1 + $0x28] sm:$0xf]
  %v34 = vld [vmem:[%s1 + $0x2c] sm:$0xf]
  %v35 = vld [vmem:[%s1 + $0x30] sm:$0xf]
  %v36 = vld [vmem:[%s1 + $0x34] sm:$0xf]
  %v37 = vld [vmem:[%s1 + $0x38] sm:$0xf]
  %v38 = vld [vmem:[%s1 + $0x3c] sm:$0xf]
  %v55 = vunpack.c.l.b16 %v23
  %v56 = vunpack.c.l.b16 %v24
  %v57 = vunpack.c.l.b16 %v25
  %v58 = vunpack.c.l.b16 %v26
  %v59 = vunpack.c.l.b16 %v27
  %v60 = vunpack.c.l.b16 %v28
  %v61 = vunpack.c.l.b16 %v29
  %v62 = vunpack.c.l.b16 %v30
  %v63 = vunpack.c.l.b16 %v31
  %v64 = vunpack.c.l.b16 %v32
  %v65 = vunpack.c.l.b16 %v33
  %v66 = vunpack.c.l.b16 %v34
  %v67 = vunpack.c.l.b16 %v35
  %v68 = vunpack.c.l.b16 %v36
  %v69 = vunpack.c.l.b16 %v37
  %v70 = vunpack.c.l.b16 %v38
  %v71 = vpack.c.b16 %v56, %v55
  %v72 = vpack.c.b16 %v58, %v57
  %v73 = vpack.c.b16 %v60, %v59
  %v74 = vpack.c.b16 %v62, %v61
  %v75 = vpack.c.b16 %v64, %v63
  %v76 = vpack.c.b16 %v66, %v65
  %v77 = vpack.c.b16 %v68, %v67
  %v78 = vpack.c.b16 %v70, %v69
  %87 = vmatpush.bf16.msra.mxu0 %v78
  %88 = vmatpush.bf16.msra.mxu0 %v77
  %89 = vmatpush.bf16.msra.mxu0 %v76
  %90 = vmatpush.bf16.msra.mxu0 %v75
  %91 = vmatpush.bf16.msra.mxu0 %v74
  %92 = vmatpush.bf16.msra.mxu0 %v73
  %93 = vmatpush.bf16.msra.mxu0 %v72
  %94 = vmatpush.bf16.msra.mxu0 %v71
  %95 = vmatmul.bf16.gmra.mxu0 %v21
  %v96 = vpop.f32.mrf.mxu0
  %v97 = vadd.f32 0.0, %v96
  %v98 = vpop.f32.mrf.mxu0
  %99 = vdwg.mxu0
  %v100 = vadd.f32 %v22, %v97
  %101 = vst [vmem:[#allocation2] sm:$0xff] %v100
  // Predicated region
  $region14: #{unet_block_forward.22} parent=0 // pred_check
    %p102 = pneg %p13
  $region15: #{unet_block_forward.22} parent=0 // pred_check_branch
    %104 = sbr.rel (%p102) target = $region17
  $region16: #{unet_block_forward.22} parent=0 // pred_region
    %v105 = vld [vmem:[#allocation2] sm:$0xff]
    %v106 = vrot.slane %v105, 4
    %v107 = vadd.f32 %v105, %v106
    %v108 = vrot.slane %v107, 2
    %v109 = vadd.f32 %v107, %v108
    %v110 = vrot.slane %v109, 1
    %v111 = vadd.f32 %v109, %v110
    %v112 = vmul.f32 %v105, %v105
    %v113 = vrot.slane %v112, 4
    %v114 = vadd.f32 %v112, %v113
    %v115 = vrot.slane %v114, 2
    %v116 = vadd.f32 %v114, %v115
    %v117 = vrot.slane %v116, 1
    %v118 = vadd.f32 %v116, %v117
    %vm119 = vcmask 1040384
    %v120 = vsel %vm119, %v111, %v118
    %vm121 = vcmask 1041408
    %v122 = vsel %vm121, %v120, 0.0
    %vm123 = vcmask 1042432
    %v124 = vsel %vm123, %v122, 0.0
    %vm125 = vcmask 1043456
    %v126 = vsel %vm125, %v124, 0.0
    %vm127 = vcmask 1044480
    %v128 = vsel %vm127, %v126, 0.0
    %vm129 = vcmask 1045504
    %v130 = vsel %vm129, %v128, 0.0
    %vm131 = vcmask 1046528
    %v132 = vsel %vm131, %v130, 0.0
    %133 = vst [vmem:[%s3] sm:$0xff] %v132
    %v134 = vpack.c.bf16 %v105, %v105
    %135 = vst [vmem:[%s2] sm:$0xf] %v134
  $region17: #{unet_block_forward.22} parent=0 // pred_fallthru
    _
  // Predicated region
  $region18: #{unet_block_forward.22} parent=0 // pred_check
    _
  $region19: #{unet_block_forward.22} parent=0 // pred_check_branch
    %137 = sbr.rel (0) target = $region21
  $region20: #{unet_block_forward.22} parent=0 // pred_region
    _
  $region21: #{unet_block_forward.22} parent=0 // pred_fallthru
    _
  // Predicated region
  $region22: #{unet_block_forward.22} parent=0 // pred_check
    _
  $region23: #{unet_block_forward.22} parent=0 // pred_check_branch
    %139 = sbr.rel (0) target = $region25
  $region24: #{unet_block_forward.22} parent=0 // pred_region
    _
  $region25: #{unet_block_forward.22} parent=0 // pred_fallthru
    _
  // Predicated region
  $region26: #{unet_block_forward.22} parent=0 // pred_check
    _
  $region27: #{unet_block_forward.22} parent=0 // pred_check_branch
    %141 = sbr.rel (0) target = $region29
  $region28: #{unet_block_forward.22} parent=0 // pred_region
    _
  $region29: #{unet_block_forward.22} parent=0 // pred_fallthru
    _
  // Predicated region
  $region30: #{unet_block_forward.22} parent=0 // pred_check
    _
  $region31: #{unet_block_forward.22} parent=0 // pred_check_branch
    %143 = sbr.rel (0) target = $region33
  $region32: #{unet_block_forward.22} parent=0 // pred_region
    _
  $region33: #{unet_block_forward.22} parent=0 // pred_fallthru
    _

// kernel: unet_block_forward.27
$region0: #{unet_block_forward.27}
  #allocation0 [shape = 'u32[]', space=smem, size = 0x4, offset = 0x4, fixed_abs, tag = 'smem constant byte address 0x4 - core index']
  #allocation1 [shape = 'u32[72,128]{1,0:T(1,128)}', space=vmem, size = 0x9000, scoped, tag = 'internal scratch']
  #allocation2 [shape = 'f32[32,128]{1,0:T(8,128)}', space=vmem, size = 0x4000, scoped, tag = 'scratch operand']
  %s0 = inlined_call_operand.vmem [shape: bf16[32,128], index: 0, kind: input, shape index: {}]
  %s1 = inlined_call_operand.vmem [shape: bf16[128,128], index: 1, kind: input, shape index: {}]
  %s2 = inlined_call_operand.vmem [shape: bf16[32,128], index: 2, kind: output, shape index: {0}]
  %s3 = inlined_call_operand.vmem [shape: f32[1,8,128], index: 3, kind: output, shape index: {1}]
  %4 = xla_tuple %s2, %s3
  %s5 = sld [smem:[#allocation0]]
  $region34: #{unet_block_forward.27} parent=0
    _
  %s7 = ssub.s32 1, %s5
  %s8 = scalar_select 0, %s7, %s5
  // Predicated region
  $region2: #{unet_block_forward.27} parent=0 // pred_check
    _
  $region3: #{unet_block_forward.27} parent=0 // pred_check_branch
    %10 = sbr.rel (0) target = $region5
  $region4: #{unet_block_forward.27} parent=0 // pred_region
    _
  $region5: #{unet_block_forward.27} parent=0 // pred_fallthru
    _
  // Predicated region
  $region6: #{unet_block_forward.27} parent=0 // pred_check
    _
  $region7: #{unet_block_forward.27} parent=0 // pred_check_branch
    %12 = sbr.rel (0) target = $region9
  $region8: #{unet_block_forward.27} parent=0 // pred_region
    _
  $region9: #{unet_block_forward.27} parent=0 // pred_fallthru
    _
  %p13 = scmp.eq.s32.totalorder 0, 0
  // Predicated region
  $region10: #{unet_block_forward.27} parent=0 // pred_check
    %p14 = pneg %p13
  $region11: #{unet_block_forward.27} parent=0 // pred_check_branch
    %16 = sbr.rel (%p14) target = $region13
  $region12: #{unet_block_forward.27} parent=0 // pred_region
    %17 = vst [vmem:[#allocation2] sm:$0xff] 0.0
    %18 = vst [vmem:[#allocation2 + $0x8] sm:$0xff] 0.0
    %19 = vst [vmem:[#allocation2 + $0x10] sm:$0xff] 0.0
    %20 = vst [vmem:[#allocation2 + $0x18] sm:$0xff] 0.0
  $region13: #{unet_block_forward.27} parent=0 // pred_fallthru
    _
  %v21 = vld [vmem:[%s0] sm:$0xf]
  %v22 = vld [vmem:[%s0 + $0x4] sm:$0xf]
  %v23 = vld [vmem:[%s0 + $0x8] sm:$0xf]
  %v24 = vld [vmem:[%s0 + $0xc] sm:$0xf]
  %v25 = vunpack.c.l.bf16 %v21
  %v26 = vunpack.c.l.bf16 %v22
  %v27 = vunpack.c.l.bf16 %v23
  %v28 = vunpack.c.l.bf16 %v24
  %v29 = vmax.f32 %v25, 0.0
  %v30 = vmax.f32 %v26, 0.0
  %v31 = vmax.f32 %v27, 0.0
  %v32 = vmax.f32 %v28, 0.0
  %v33 = vpack.c.bf16 %v30, %v29
  %v34 = vpack.c.bf16 %v32, %v31
  %v35 = vld [vmem:[#allocation2] sm:$0xff]
  %v36 = vld [vmem:[#allocation2 + $0x8] sm:$0xff]
  %v37 = vld [vmem:[#allocation2 + $0x10] sm:$0xff]
  %v38 = vld [vmem:[#allocation2 + $0x18] sm:$0xff]
  %v39 = vld [vmem:[%s1] sm:$0xf]
  %v40 = vld [vmem:[%s1 + $0x4] sm:$0xf]
  %v41 = vld [vmem:[%s1 + $0x8] sm:$0xf]
  %v42 = vld [vmem:[%s1 + $0xc] sm:$0xf]
  %v43 = vld [vmem:[%s1 + $0x10] sm:$0xf]
  %v44 = vld [vmem:[%s1 + $0x14] sm:$0xf]
  %v45 = vld [vmem:[%s1 + $0x18] sm:$0xf]
  %v46 = vld [vmem:[%s1 + $0x1c] sm:$0xf]
  %v47 = vld [vmem:[%s1 + $0x20] sm:$0xf]
  %v48 = vld [vmem:[%s1 + $0x24] sm:$0xf]
  %v49 = vld [vmem:[%s1 + $0x28] sm:$0xf]
  %v50 = vld [vmem:[%s1 + $0x2c] sm:$0xf]
  %v51 = vld [vmem:[%s1 + $0x30] sm:$0xf]
  %v52 = vld [vmem:[%s1 + $0x34] sm:$0xf]
  %v53 = vld [vmem:[%s1 + $0x38] sm:$0xf]
  %v54 = vld [vmem:[%s1 + $0x3c] sm:$0xf]
  %v71 = vunpack.c.l.b16 %v39
  %v72 = vunpack.c.l.b16 %v40
  %v73 = vunpack.c.l.b16 %v41
  %v74 = vunpack.c.l.b16 %v42
  %v75 = vunpack.c.l.b16 %v43
  %v76 = vunpack.c.l.b16 %v44
  %v77 = vunpack.c.l.b16 %v45
  %v78 = vunpack.c.l.b16 %v46
  %v79 = vunpack.c.l.b16 %v47
  %v80 = vunpack.c.l.b16 %v48
  %v81 = vunpack.c.l.b16 %v49
  %v82 = vunpack.c.l.b16 %v50
  %v83 = vunpack.c.l.b16 %v51
  %v84 = vunpack.c.l.b16 %v52
  %v85 = vunpack.c.l.b16 %v53
  %v86 = vunpack.c.l.b16 %v54
  %v87 = vpack.c.b16 %v72, %v71
  %v88 = vpack.c.b16 %v74, %v73
  %v89 = vpack.c.b16 %v76, %v75
  %v90 = vpack.c.b16 %v78, %v77
  %v91 = vpack.c.b16 %v80, %v79
  %v92 = vpack.c.b16 %v82, %v81
  %v93 = vpack.c.b16 %v84, %v83
  %v94 = vpack.c.b16 %v86, %v85
  %103 = vmatpush.bf16.msra.mxu0 %v94
  %104 = vmatpush.bf16.msra.mxu0 %v93
  %105 = vmatpush.bf16.msra.mxu0 %v92
  %106 = vmatpush.bf16.msra.mxu0 %v91
  %107 = vmatpush.bf16.msra.mxu0 %v90
  %108 = vmatpush.bf16.msra.mxu0 %v89
  %109 = vmatpush.bf16.msra.mxu0 %v88
  %110 = vmatpush.bf16.msra.mxu0 %v87
  %111 = vmatmul.bf16.gmra.mxu0 %v33
  %v112 = vpop.f32.mrf.mxu0
  %v113 = vadd.f32 0.0, %v112
  %v114 = vpop.f32.mrf.mxu0
  %v115 = vadd.f32 0.0, %v114
  %116 = vmatmul.bf16.gmra.mxu0 %v34
  %v117 = vpop.f32.mrf.mxu0
  %v118 = vadd.f32 0.0, %v117
  %v119 = vpop.f32.mrf.mxu0
  %v120 = vadd.f32 0.0, %v119
  %121 = vdwg.mxu0
  %v122 = vadd.f32 %v35, %v113
  %v123 = vadd.f32 %v36, %v115
  %v124 = vadd.f32 %v37, %v118
  %v125 = vadd.f32 %v38, %v120
  %126 = vst [vmem:[#allocation2] sm:$0xff] %v122
  %127 = vst [vmem:[#allocation2 + $0x8] sm:$0xff] %v123
  %128 = vst [vmem:[#allocation2 + $0x10] sm:$0xff] %v124
  %129 = vst [vmem:[#allocation2 + $0x18] sm:$0xff] %v125
  // Predicated region
  $region14: #{unet_block_forward.27} parent=0 // pred_check
    %p130 = pneg %p13
  $region15: #{unet_block_forward.27} parent=0 // pred_check_branch
    %132 = sbr.rel (%p130) target = $region17
  $region16: #{unet_block_forward.27} parent=0 // pred_region
    %v133 = vld [vmem:[#allocation2] sm:$0xff]
    %v134 = vld [vmem:[#allocation2 + $0x8] sm:$0xff]
    %v135 = vld [vmem:[#allocation2 + $0x10] sm:$0xff]
    %v136 = vld [vmem:[#allocation2 + $0x18] sm:$0xff]
    %v137 = vadd.f32 %v133, %v134
    %v138 = vadd.f32 %v137, %v135
    %v139 = vadd.f32 %v138, %v136
    %v140 = vrot.slane %v139, 4
    %v141 = vadd.f32 %v139, %v140
    %v142 = vrot.slane %v141, 2
    %v143 = vadd.f32 %v141, %v142
    %v144 = vrot.slane %v143, 1
    %v145 = vadd.f32 %v143, %v144
    %v146 = vmul.f32 %v133, %v133
    %v147 = vmul.f32 %v134, %v134
    %v148 = vmul.f32 %v135, %v135
    %v149 = vmul.f32 %v136, %v136
    %v150 = vadd.f32 %v146, %v147
    %v151 = vadd.f32 %v150, %v148
    %v152 = vadd.f32 %v151, %v149
    %v153 = vrot.slane %v152, 4
    %v154 = vadd.f32 %v152, %v153
    %v155 = vrot.slane %v154, 2
    %v156 = vadd.f32 %v154, %v155
    %v157 = vrot.slane %v156, 1
    %v158 = vadd.f32 %v156, %v157
    %vm159 = vcmask 1040384
    %v160 = vsel %vm159, %v145, %v158
    %vm161 = vcmask 1041408
    %v162 = vsel %vm161, %v160, 0.0
    %vm163 = vcmask 1042432
    %v164 = vsel %vm163, %v162, 0.0
    %vm165 = vcmask 1043456
    %v166 = vsel %vm165, %v164, 0.0
    %vm167 = vcmask 1044480
    %v168 = vsel %vm167, %v166, 0.0
    %vm169 = vcmask 1045504
    %v170 = vsel %vm169, %v168, 0.0
    %vm171 = vcmask 1046528
    %v172 = vsel %vm171, %v170, 0.0
    %173 = vst [vmem:[%s3] sm:$0xff] %v172
    %v174 = vpack.c.bf16 %v133, %v133
    %v175 = vpack.c.bf16 %v134, %v134
    %v176 = vpack.c.bf16 %v135, %v135
    %v177 = vpack.c.bf16 %v136, %v136
    %178 = vst [vmem:[%s2] sm:$0xf] %v174
    %179 = vst [vmem:[%s2 + $0x4] sm:$0xf] %v175
    %180 = vst [vmem:[%s2 + $0x8] sm:$0xf] %v176
    %181 = vst [vmem:[%s2 + $0xc] sm:$0xf] %v177
  $region17: #{unet_block_forward.27} parent=0 // pred_fallthru
    _
  // Predicated region
  $region18: #{unet_block_forward.27} parent=0 // pred_check
    _
  $region19: #{unet_block_forward.27} parent=0 // pred_check_branch
    %183 = sbr.rel (0) target = $region21
  $region20: #{unet_block_forward.27} parent=0 // pred_region
    _
  $region21: #{unet_block_forward.27} parent=0 // pred_fallthru
    _
  // Predicated region
  $region22: #{unet_block_forward.27} parent=0 // pred_check
    _
  $region23: #{unet_block_forward.27} parent=0 // pred_check_branch
    %185 = sbr.rel (0) target = $region25
  $region24: #{unet_block_forward.27} parent=0 // pred_region
    _
  $region25: #{unet_block_forward.27} parent=0 // pred_fallthru
    _
  // Predicated region
  $region26: #{unet_block_forward.27} parent=0 // pred_check
    _
  $region27: #{unet_block_forward.27} parent=0 // pred_check_branch
    %187 = sbr.rel (0) target = $region29
  $region28: #{unet_block_forward.27} parent=0 // pred_region
    _
  $region29: #{unet_block_forward.27} parent=0 // pred_fallthru
    _
  // Predicated region
  $region30: #{unet_block_forward.27} parent=0 // pred_check
    _
  $region31: #{unet_block_forward.27} parent=0 // pred_check_branch
    %189 = sbr.rel (0) target = $region33
  $region32: #{unet_block_forward.27} parent=0 // pred_region
    _
  $region33: #{unet_block_forward.27} parent=0 // pred_fallthru
    _

// kernel: unet_block_forward.31
$region0: #{unet_block_forward.31}
  #allocation0 [shape = 'u32[]', space=smem, size = 0x4, offset = 0x4, fixed_abs, tag = 'smem constant byte address 0x4 - core index']
  #allocation1 [shape = 'u32[72,128]{1,0:T(1,128)}', space=vmem, size = 0x9000, scoped, tag = 'internal scratch']
  %s0 = inlined_call_operand.vmem [shape: bf16[128,128], index: 0, kind: input, shape index: {}]
  %s1 = inlined_call_operand.vmem [shape: f32[8,128], index: 1, kind: input, shape index: {}]
  %s2 = inlined_call_operand.vmem [shape: bf16[128,128], index: 2, kind: output, shape index: {}]
  %s3 = sld [smem:[#allocation0]]
  $region18: #{unet_block_forward.31} parent=0
    _
  %s5 = ssub.s32 1, %s3
  %s6 = scalar_select 0, %s5, %s3
  // Predicated region
  $region2: #{unet_block_forward.31} parent=0 // pred_check
    _
  $region3: #{unet_block_forward.31} parent=0 // pred_check_branch
    %8 = sbr.rel (0) target = $region5
  $region4: #{unet_block_forward.31} parent=0 // pred_region
    _
  $region5: #{unet_block_forward.31} parent=0 // pred_fallthru
    _
  // Predicated region
  $region6: #{unet_block_forward.31} parent=0 // pred_check
    _
  $region7: #{unet_block_forward.31} parent=0 // pred_check_branch
    %10 = sbr.rel (0) target = $region9
  $region8: #{unet_block_forward.31} parent=0 // pred_region
    _
  $region9: #{unet_block_forward.31} parent=0 // pred_fallthru
    _
  %v11 = vld [vmem:[%s0] sm:$0xf]
  %v12 = vld [vmem:[%s0 + $0x4] sm:$0xf]
  %v13 = vld [vmem:[%s0 + $0x8] sm:$0xf]
  %v14 = vld [vmem:[%s0 + $0xc] sm:$0xf]
  %v15 = vld [vmem:[%s0 + $0x10] sm:$0xf]
  %v16 = vld [vmem:[%s0 + $0x14] sm:$0xf]
  %v17 = vld [vmem:[%s0 + $0x18] sm:$0xf]
  %v18 = vld [vmem:[%s0 + $0x1c] sm:$0xf]
  %v19 = vld [vmem:[%s0 + $0x20] sm:$0xf]
  %v20 = vld [vmem:[%s0 + $0x24] sm:$0xf]
  %v21 = vld [vmem:[%s0 + $0x28] sm:$0xf]
  %v22 = vld [vmem:[%s0 + $0x2c] sm:$0xf]
  %v23 = vld [vmem:[%s0 + $0x30] sm:$0xf]
  %v24 = vld [vmem:[%s0 + $0x34] sm:$0xf]
  %v25 = vld [vmem:[%s0 + $0x38] sm:$0xf]
  %v26 = vld [vmem:[%s0 + $0x3c] sm:$0xf]
  %v27 = vunpack.c.l.bf16 %v11
  %v28 = vunpack.c.l.bf16 %v12
  %v29 = vunpack.c.l.bf16 %v13
  %v30 = vunpack.c.l.bf16 %v14
  %v31 = vunpack.c.l.bf16 %v15
  %v32 = vunpack.c.l.bf16 %v16
  %v33 = vunpack.c.l.bf16 %v17
  %v34 = vunpack.c.l.bf16 %v18
  %v35 = vunpack.c.l.bf16 %v19
  %v36 = vunpack.c.l.bf16 %v20
  %v37 = vunpack.c.l.bf16 %v21
  %v38 = vunpack.c.l.bf16 %v22
  %v39 = vunpack.c.l.bf16 %v23
  %v40 = vunpack.c.l.bf16 %v24
  %v41 = vunpack.c.l.bf16 %v25
  %v42 = vunpack.c.l.bf16 %v26
  %v43 = vld [vmem:[%s1] sm:$0x1]
  %v44 = vperm.slane %v43, 0
  %v45 = vmul.f32 %v27, %v44
  %v46 = vmul.f32 %v28, %v44
  %v47 = vmul.f32 %v29, %v44
  %v48 = vmul.f32 %v30, %v44
  %v49 = vmul.f32 %v31, %v44
  %v50 = vmul.f32 %v32, %v44
  %v51 = vmul.f32 %v33, %v44
  %v52 = vmul.f32 %v34, %v44
  %v53 = vmul.f32 %v35, %v44
  %v54 = vmul.f32 %v36, %v44
  %v55 = vmul.f32 %v37, %v44
  %v56 = vmul.f32 %v38, %v44
  %v57 = vmul.f32 %v39, %v44
  %v58 = vmul.f32 %v40, %v44
  %v59 = vmul.f32 %v41, %v44
  %v60 = vmul.f32 %v42, %v44
  %v61 = vld [vmem:[%s1 + $0x1] sm:$0x1]
  %v62 = vperm.slane %v61, 0
  %v63 = vadd.f32 %v45, %v62
  %v64 = vadd.f32 %v46, %v62
  %v65 = vadd.f32 %v47, %v62
  %v66 = vadd.f32 %v48, %v62
  %v67 = vadd.f32 %v49, %v62
  %v68 = vadd.f32 %v50, %v62
  %v69 = vadd.f32 %v51, %v62
  %v70 = vadd.f32 %v52, %v62
  %v71 = vadd.f32 %v53, %v62
  %v72 = vadd.f32 %v54, %v62
  %v73 = vadd.f32 %v55, %v62
  %v74 = vadd.f32 %v56, %v62
  %v75 = vadd.f32 %v57, %v62
  %v76 = vadd.f32 %v58, %v62
  %v77 = vadd.f32 %v59, %v62
  %v78 = vadd.f32 %v60, %v62
  %v79 = vpack.c.bf16 %v63, %v63
  %v80 = vpack.c.bf16 %v64, %v64
  %v81 = vpack.c.bf16 %v65, %v65
  %v82 = vpack.c.bf16 %v66, %v66
  %v83 = vpack.c.bf16 %v67, %v67
  %v84 = vpack.c.bf16 %v68, %v68
  %v85 = vpack.c.bf16 %v69, %v69
  %v86 = vpack.c.bf16 %v70, %v70
  %v87 = vpack.c.bf16 %v71, %v71
  %v88 = vpack.c.bf16 %v72, %v72
  %v89 = vpack.c.bf16 %v73, %v73
  %v90 = vpack.c.bf16 %v74, %v74
  %v91 = vpack.c.bf16 %v75, %v75
  %v92 = vpack.c.bf16 %v76, %v76
  %v93 = vpack.c.bf16 %v77, %v77
  %v94 = vpack.c.bf16 %v78, %v78
  %95 = vst [vmem:[%s2] sm:$0xf] %v79
  %96 = vst [vmem:[%s2 + $0x4] sm:$0xf] %v80
  %97 = vst [vmem:[%s2 + $0x8] sm:$0xf] %v81
  %98 = vst [vmem:[%s2 + $0xc] sm:$0xf] %v82
  %99 = vst [vmem:[%s2 + $0x10] sm:$0xf] %v83
  %100 = vst [vmem:[%s2 + $0x14] sm:$0xf] %v84
  %101 = vst [vmem:[%s2 + $0x18] sm:$0xf] %v85
  %102 = vst [vmem:[%s2 + $0x1c] sm:$0xf] %v86
  %103 = vst [vmem:[%s2 + $0x20] sm:$0xf] %v87
  %104 = vst [vmem:[%s2 + $0x24] sm:$0xf] %v88
  %105 = vst [vmem:[%s2 + $0x28] sm:$0xf] %v89
  %106 = vst [vmem:[%s2 + $0x2c] sm:$0xf] %v90
  %107 = vst [vmem:[%s2 + $0x30] sm:$0xf] %v91
  %108 = vst [vmem:[%s2 + $0x34] sm:$0xf] %v92
  %109 = vst [vmem:[%s2 + $0x38] sm:$0xf] %v93
  %110 = vst [vmem:[%s2 + $0x3c] sm:$0xf] %v94
  // Predicated region
  $region10: #{unet_block_forward.31} parent=0 // pred_check
    _
  $region11: #{unet_block_forward.31} parent=0 // pred_check_branch
    %112 = sbr.rel (0) target = $region13
  $region12: #{unet_block_forward.31} parent=0 // pred_region
    _
  $region13: #{unet_block_forward.31} parent=0 // pred_fallthru
    _
  // Predicated region
  $region14: #{unet_block_forward.31} parent=0 // pred_check
    _
  $region15: #{unet_block_forward.31} parent=0 // pred_check_branch
    %114 = sbr.rel (0) target = $region17
  $region16: #{unet_block_forward.31} parent=0 // pred_region
    _
  $region17: #{unet_block_forward.31} parent=0 // pred_fallthru
    _

// kernel: unet_block_forward.32
$region0: #{unet_block_forward.32}
  #allocation0 [shape = 'u32[]', space=smem, size = 0x4, offset = 0x4, fixed_abs, tag = 'smem constant byte address 0x4 - core index']
  #allocation1 [shape = 'u32[72,128]{1,0:T(1,128)}', space=vmem, size = 0x9000, scoped, tag = 'internal scratch']
  #allocation2 [shape = 'f32[128,128]{1,0:T(8,128)}', space=vmem, size = 0x10000, scoped, tag = 'scratch operand']
  %s0 = inlined_call_operand.vmem [shape: bf16[128,128], index: 0, kind: input, shape index: {}]
  %s1 = inlined_call_operand.vmem [shape: bf16[128,128], index: 1, kind: input, shape index: {}]
  %s2 = inlined_call_operand.vmem [shape: f32[1,128], index: 2, kind: input, shape index: {}]
  %s3 = inlined_call_operand.vmem [shape: bf16[128,128], index: 3, kind: output, shape index: {}]
  %s4 = sld [smem:[#allocation0]]
  $region30: #{unet_block_forward.32} parent=0
    _
  %s6 = ssub.s32 1, %s4
  %s7 = scalar_select 0, %s6, %s4
  // Predicated region
  $region2: #{unet_block_forward.32} parent=0 // pred_check
    _
  $region3: #{unet_block_forward.32} parent=0 // pred_check_branch
    %9 = sbr.rel (0) target = $region5
  $region4: #{unet_block_forward.32} parent=0 // pred_region
    _
  $region5: #{unet_block_forward.32} parent=0 // pred_fallthru
    _
  // Predicated region
  $region6: #{unet_block_forward.32} parent=0 // pred_check
    _
  $region7: #{unet_block_forward.32} parent=0 // pred_check_branch
    %11 = sbr.rel (0) target = $region9
  $region8: #{unet_block_forward.32} parent=0 // pred_region
    _
  $region9: #{unet_block_forward.32} parent=0 // pred_fallthru
    _
  // Predicated region
  $region10: #{unet_block_forward.32} parent=0 // pred_check
    _
  $region11: #{unet_block_forward.32} parent=0 // pred_check_branch
    %13 = sbr.rel (0) target = $region13
  $region12: #{unet_block_forward.32} parent=0 // pred_region
    _
  $region13: #{unet_block_forward.32} parent=0 // pred_fallthru
    _
  %p14 = scmp.eq.s32.totalorder 0, 0
  // Predicated region
  $region14: #{unet_block_forward.32} parent=0 // pred_check
    %p15 = pneg %p14
  $region15: #{unet_block_forward.32} parent=0 // pred_check_branch
    %17 = sbr.rel (%p15) target = $region17
  $region16: #{unet_block_forward.32} parent=0 // pred_region
    %18 = vst [vmem:[#allocation2] sm:$0xff] 0.0
    %19 = vst [vmem:[#allocation2 + $0x8] sm:$0xff] 0.0
    %20 = vst [vmem:[#allocation2 + $0x10] sm:$0xff] 0.0
    %21 = vst [vmem:[#allocation2 + $0x18] sm:$0xff] 0.0
    %22 = vst [vmem:[#allocation2 + $0x20] sm:$0xff] 0.0
    %23 = vst [vmem:[#allocation2 + $0x28] sm:$0xff] 0.0
    %24 = vst [vmem:[#allocation2 + $0x30] sm:$0xff] 0.0
    %25 = vst [vmem:[#allocation2 + $0x38] sm:$0xff] 0.0
    %26 = vst [vmem:[#allocation2 + $0x40] sm:$0xff] 0.0
    %27 = vst [vmem:[#allocation2 + $0x48] sm:$0xff] 0.0
    %28 = vst [vmem:[#allocation2 + $0x50] sm:$0xff] 0.0
    %29 = vst [vmem:[#allocation2 + $0x58] sm:$0xff] 0.0
    %30 = vst [vmem:[#allocation2 + $0x60] sm:$0xff] 0.0
    %31 = vst [vmem:[#allocation2 + $0x68] sm:$0xff] 0.0
    %32 = vst [vmem:[#allocation2 + $0x70] sm:$0xff] 0.0
    %33 = vst [vmem:[#allocation2 + $0x78] sm:$0xff] 0.0
  $region17: #{unet_block_forward.32} parent=0 // pred_fallthru
    _
  %v34 = vld [vmem:[%s0] sm:$0xf]
  %v35 = vld [vmem:[%s0 + $0x4] sm:$0xf]
  %v36 = vld [vmem:[%s0 + $0x8] sm:$0xf]
  %v37 = vld [vmem:[%s0 + $0xc] sm:$0xf]
  %v38 = vld [vmem:[%s0 + $0x10] sm:$0xf]
  %v39 = vld [vmem:[%s0 + $0x14] sm:$0xf]
  %v40 = vld [vmem:[%s0 + $0x18] sm:$0xf]
  %v41 = vld [vmem:[%s0 + $0x1c] sm:$0xf]
  %v42 = vld [vmem:[%s0 + $0x20] sm:$0xf]
  %v43 = vld [vmem:[%s0 + $0x24] sm:$0xf]
  %v44 = vld [vmem:[%s0 + $0x28] sm:$0xf]
  %v45 = vld [vmem:[%s0 + $0x2c] sm:$0xf]
  %v46 = vld [vmem:[%s0 + $0x30] sm:$0xf]
  %v47 = vld [vmem:[%s0 + $0x34] sm:$0xf]
  %v48 = vld [vmem:[%s0 + $0x38] sm:$0xf]
  %v49 = vld [vmem:[%s0 + $0x3c] sm:$0xf]
  %v50 = vunpack.c.l.bf16 %v34
  %v51 = vunpack.c.l.bf16 %v35
  %v52 = vunpack.c.l.bf16 %v36
  %v53 = vunpack.c.l.bf16 %v37
  %v54 = vunpack.c.l.bf16 %v38
  %v55 = vunpack.c.l.bf16 %v39
  %v56 = vunpack.c.l.bf16 %v40
  %v57 = vunpack.c.l.bf16 %v41
  %v58 = vunpack.c.l.bf16 %v42
  %v59 = vunpack.c.l.bf16 %v43
  %v60 = vunpack.c.l.bf16 %v44
  %v61 = vunpack.c.l.bf16 %v45
  %v62 = vunpack.c.l.bf16 %v46
  %v63 = vunpack.c.l.bf16 %v47
  %v64 = vunpack.c.l.bf16 %v48
  %v65 = vunpack.c.l.bf16 %v49
  %v66 = vmax.f32 %v50, 0.0
  %v67 = vmax.f32 %v51, 0.0
  %v68 = vmax.f32 %v52, 0.0
  %v69 = vmax.f32 %v53, 0.0
  %v70 = vmax.f32 %v54, 0.0
  %v71 = vmax.f32 %v55, 0.0
  %v72 = vmax.f32 %v56, 0.0
  %v73 = vmax.f32 %v57, 0.0
  %v74 = vmax.f32 %v58, 0.0
  %v75 = vmax.f32 %v59, 0.0
  %v76 = vmax.f32 %v60, 0.0
  %v77 = vmax.f32 %v61, 0.0
  %v78 = vmax.f32 %v62, 0.0
  %v79 = vmax.f32 %v63, 0.0
  %v80 = vmax.f32 %v64, 0.0
  %v81 = vmax.f32 %v65, 0.0
  %v82 = vpack.c.bf16 %v67, %v66
  %v83 = vpack.c.bf16 %v69, %v68
  %v84 = vpack.c.bf16 %v71, %v70
  %v85 = vpack.c.bf16 %v73, %v72
  %v86 = vpack.c.bf16 %v75, %v74
  %v87 = vpack.c.bf16 %v77, %v76
  %v88 = vpack.c.bf16 %v79, %v78
  %v89 = vpack.c.bf16 %v81, %v80
  %v90 = vld [vmem:[#allocation2] sm:$0xff]
  %v91 = vld [vmem:[#allocation2 + $0x8] sm:$0xff]
  %v92 = vld [vmem:[#allocation2 + $0x10] sm:$0xff]
  %v93 = vld [vmem:[#allocation2 + $0x18] sm:$0xff]
  %v94 = vld [vmem:[#allocation2 + $0x20] sm:$0xff]
  %v95 = vld [vmem:[#allocation2 + $0x28] sm:$0xff]
  %v96 = vld [vmem:[#allocation2 + $0x30] sm:$0xff]
  %v97 = vld [vmem:[#allocation2 + $0x38] sm:$0xff]
  %v98 = vld [vmem:[#allocation2 + $0x40] sm:$0xff]
  %v99 = vld [vmem:[#allocation2 + $0x48] sm:$0xff]
  %v100 = vld [vmem:[#allocation2 + $0x50] sm:$0xff]
  %v101 = vld [vmem:[#allocation2 + $0x58] sm:$0xff]
  %v102 = vld [vmem:[#allocation2 + $0x60] sm:$0xff]
  %v103 = vld [vmem:[#allocation2 + $0x68] sm:$0xff]
  %v104 = vld [vmem:[#allocation2 + $0x70] sm:$0xff]
  %v105 = vld [vmem:[#allocation2 + $0x78] sm:$0xff]
  %v106 = vld [vmem:[%s1] sm:$0xf]
  %v107 = vld [vmem:[%s1 + $0x4] sm:$0xf]
  %v108 = vld [vmem:[%s1 + $0x8] sm:$0xf]
  %v109 = vld [vmem:[%s1 + $0xc] sm:$0xf]
  %v110 = vld [vmem:[%s1 + $0x10] sm:$0xf]
  %v111 = vld [vmem:[%s1 + $0x14] sm:$0xf]
  %v112 = vld [vmem:[%s1 + $0x18] sm:$0xf]
  %v113 = vld [vmem:[%s1 + $0x1c] sm:$0xf]
  %v114 = vld [vmem:[%s1 + $0x20] sm:$0xf]
  %v115 = vld [vmem:[%s1 + $0x24] sm:$0xf]
  %v116 = vld [vmem:[%s1 + $0x28] sm:$0xf]
  %v117 = vld [vmem:[%s1 + $0x2c] sm:$0xf]
  %v118 = vld [vmem:[%s1 + $0x30] sm:$0xf]
  %v119 = vld [vmem:[%s1 + $0x34] sm:$0xf]
  %v120 = vld [vmem:[%s1 + $0x38] sm:$0xf]
  %v121 = vld [vmem:[%s1 + $0x3c] sm:$0xf]
  %v138 = vunpack.c.l.b16 %v106
  %v139 = vunpack.c.l.b16 %v107
  %v140 = vunpack.c.l.b16 %v108
  %v141 = vunpack.c.l.b16 %v109
  %v142 = vunpack.c.l.b16 %v110
  %v143 = vunpack.c.l.b16 %v111
  %v144 = vunpack.c.l.b16 %v112
  %v145 = vunpack.c.l.b16 %v113
  %v146 = vunpack.c.l.b16 %v114
  %v147 = vunpack.c.l.b16 %v115
  %v148 = vunpack.c.l.b16 %v116
  %v149 = vunpack.c.l.b16 %v117
  %v150 = vunpack.c.l.b16 %v118
  %v151 = vunpack.c.l.b16 %v119
  %v152 = vunpack.c.l.b16 %v120
  %v153 = vunpack.c.l.b16 %v121
  %v154 = vpack.c.b16 %v139, %v138
  %v155 = vpack.c.b16 %v141, %v140
  %v156 = vpack.c.b16 %v143, %v142
  %v157 = vpack.c.b16 %v145, %v144
  %v158 = vpack.c.b16 %v147, %v146
  %v159 = vpack.c.b16 %v149, %v148
  %v160 = vpack.c.b16 %v151, %v150
  %v161 = vpack.c.b16 %v153, %v152
  %170 = vmatpush.bf16.msra.mxu0 %v161
  %171 = vmatpush.bf16.msra.mxu0 %v160
  %172 = vmatpush.bf16.msra.mxu0 %v159
  %173 = vmatpush.bf16.msra.mxu0 %v158
  %174 = vmatpush.bf16.msra.mxu0 %v157
  %175 = vmatpush.bf16.msra.mxu0 %v156
  %176 = vmatpush.bf16.msra.mxu0 %v155
  %177 = vmatpush.bf16.msra.mxu0 %v154
  %178 = vmatmul.bf16.gmra.mxu0 %v82
  %v179 = vpop.f32.mrf.mxu0
  %v180 = vadd.f32 0.0, %v179
  %v181 = vpop.f32.mrf.mxu0
  %v182 = vadd.f32 0.0, %v181
  %183 = vmatmul.bf16.gmra.mxu0 %v83
  %v184 = vpop.f32.mrf.mxu0
  %v185 = vadd.f32 0.0, %v184
  %v186 = vpop.f32.mrf.mxu0
  %v187 = vadd.f32 0.0, %v186
  %188 = vmatmul.bf16.gmra.mxu0 %v84
  %v189 = vpop.f32.mrf.mxu0
  %v190 = vadd.f32 0.0, %v189
  %v191 = vpop.f32.mrf.mxu0
  %v192 = vadd.f32 0.0, %v191
  %193 = vmatmul.bf16.gmra.mxu0 %v85
  %v194 = vpop.f32.mrf.mxu0
  %v195 = vadd.f32 0.0, %v194
  %v196 = vpop.f32.mrf.mxu0
  %v197 = vadd.f32 0.0, %v196
  %198 = vmatmul.bf16.gmra.mxu0 %v86
  %v199 = vpop.f32.mrf.mxu0
  %v200 = vadd.f32 0.0, %v199
  %v201 = vpop.f32.mrf.mxu0
  %v202 = vadd.f32 0.0, %v201
  %203 = vmatmul.bf16.gmra.mxu0 %v87
  %v204 = vpop.f32.mrf.mxu0
  %v205 = vadd.f32 0.0, %v204
  %v206 = vpop.f32.mrf.mxu0
  %v207 = vadd.f32 0.0, %v206
  %208 = vmatmul.bf16.gmra.mxu0 %v88
  %v209 = vpop.f32.mrf.mxu0
  %v210 = vadd.f32 0.0, %v209
  %v211 = vpop.f32.mrf.mxu0
  %v212 = vadd.f32 0.0, %v211
  %213 = vmatmul.bf16.gmra.mxu0 %v89
  %v214 = vpop.f32.mrf.mxu0
  %v215 = vadd.f32 0.0, %v214
  %v216 = vpop.f32.mrf.mxu0
  %v217 = vadd.f32 0.0, %v216
  %218 = vdwg.mxu0
  %v219 = vadd.f32 %v90, %v180
  %v220 = vadd.f32 %v91, %v182
  %v221 = vadd.f32 %v92, %v185
  %v222 = vadd.f32 %v93, %v187
  %v223 = vadd.f32 %v94, %v190
  %v224 = vadd.f32 %v95, %v192
  %v225 = vadd.f32 %v96, %v195
  %v226 = vadd.f32 %v97, %v197
  %v227 = vadd.f32 %v98, %v200
  %v228 = vadd.f32 %v99, %v202
  %v229 = vadd.f32 %v100, %v205
  %v230 = vadd.f32 %v101, %v207
  %v231 = vadd.f32 %v102, %v210
  %v232 = vadd.f32 %v103, %v212
  %v233 = vadd.f32 %v104, %v215
  %v234 = vadd.f32 %v105, %v217
  %235 = vst [vmem:[#allocation2] sm:$0xff] %v219
  %236 = vst [vmem:[#allocation2 + $0x8] sm:$0xff] %v220
  %237 = vst [vmem:[#allocation2 + $0x10] sm:$0xff] %v221
  %238 = vst [vmem:[#allocation2 + $0x18] sm:$0xff] %v222
  %239 = vst [vmem:[#allocation2 + $0x20] sm:$0xff] %v223
  %240 = vst [vmem:[#allocation2 + $0x28] sm:$0xff] %v224
  %241 = vst [vmem:[#allocation2 + $0x30] sm:$0xff] %v225
  %242 = vst [vmem:[#allocation2 + $0x38] sm:$0xff] %v226
  %243 = vst [vmem:[#allocation2 + $0x40] sm:$0xff] %v227
  %244 = vst [vmem:[#allocation2 + $0x48] sm:$0xff] %v228
  %245 = vst [vmem:[#allocation2 + $0x50] sm:$0xff] %v229
  %246 = vst [vmem:[#allocation2 + $0x58] sm:$0xff] %v230
  %247 = vst [vmem:[#allocation2 + $0x60] sm:$0xff] %v231
  %248 = vst [vmem:[#allocation2 + $0x68] sm:$0xff] %v232
  %249 = vst [vmem:[#allocation2 + $0x70] sm:$0xff] %v233
  %250 = vst [vmem:[#allocation2 + $0x78] sm:$0xff] %v234
  // Predicated region
  $region18: #{unet_block_forward.32} parent=0 // pred_check
    %p251 = pneg %p14
  $region19: #{unet_block_forward.32} parent=0 // pred_check_branch
    %253 = sbr.rel (%p251) target = $region21
  $region20: #{unet_block_forward.32} parent=0 // pred_region
    %v254 = vld [vmem:[#allocation2] sm:$0xff]
    %v255 = vld [vmem:[#allocation2 + $0x8] sm:$0xff]
    %v256 = vld [vmem:[#allocation2 + $0x10] sm:$0xff]
    %v257 = vld [vmem:[#allocation2 + $0x18] sm:$0xff]
    %v258 = vld [vmem:[#allocation2 + $0x20] sm:$0xff]
    %v259 = vld [vmem:[#allocation2 + $0x28] sm:$0xff]
    %v260 = vld [vmem:[#allocation2 + $0x30] sm:$0xff]
    %v261 = vld [vmem:[#allocation2 + $0x38] sm:$0xff]
    %v262 = vld [vmem:[#allocation2 + $0x40] sm:$0xff]
    %v263 = vld [vmem:[#allocation2 + $0x48] sm:$0xff]
    %v264 = vld [vmem:[#allocation2 + $0x50] sm:$0xff]
    %v265 = vld [vmem:[#allocation2 + $0x58] sm:$0xff]
    %v266 = vld [vmem:[#allocation2 + $0x60] sm:$0xff]
    %v267 = vld [vmem:[#allocation2 + $0x68] sm:$0xff]
    %v268 = vld [vmem:[#allocation2 + $0x70] sm:$0xff]
    %v269 = vld [vmem:[#allocation2 + $0x78] sm:$0xff]
    %v270 = vld [vmem:[%s2] sm:$0x1]
    %v272 = vperm.slane %v270, 0
    %v274 = vadd.f32 %v254, %v272
    %v275 = vadd.f32 %v255, %v272
    %v276 = vadd.f32 %v256, %v272
    %v277 = vadd.f32 %v257, %v272
    %v278 = vadd.f32 %v258, %v272
    %v279 = vadd.f32 %v259, %v272
    %v280 = vadd.f32 %v260, %v272
    %v281 = vadd.f32 %v261, %v272
    %v282 = vadd.f32 %v262, %v272
    %v283 = vadd.f32 %v263, %v272
    %v284 = vadd.f32 %v264, %v272
    %v285 = vadd.f32 %v265, %v272
    %v286 = vadd.f32 %v266, %v272
    %v287 = vadd.f32 %v267, %v272
    %v288 = vadd.f32 %v268, %v272
    %v289 = vadd.f32 %v269, %v272
    %v290 = vtanh.pop %v274
    %v291 = vtanh.pop %v275
    %v292 = vtanh.pop %v276
    %v293 = vtanh.pop %v277
    %v294 = vtanh.pop %v278
    %v295 = vtanh.pop %v279
    %v296 = vtanh.pop %v280
    %v297 = vtanh.pop %v281
    %v298 = vtanh.pop %v282
    %v299 = vtanh.pop %v283
    %v300 = vtanh.pop %v284
    %v301 = vtanh.pop %v285
    %v302 = vtanh.pop %v286
    %v303 = vtanh.pop %v287
    %v304 = vtanh.pop %v288
    %v305 = vtanh.pop %v289
    %v306 = vpack.c.bf16 %v290, %v290
    %v307 = vpack.c.bf16 %v291, %v291
    %v308 = vpack.c.bf16 %v292, %v292
    %v309 = vpack.c.bf16 %v293, %v293
    %v310 = vpack.c.bf16 %v294, %v294
    %v311 = vpack.c.bf16 %v295, %v295
    %v312 = vpack.c.bf16 %v296, %v296
    %v313 = vpack.c.bf16 %v297, %v297
    %v314 = vpack.c.bf16 %v298, %v298
    %v315 = vpack.c.bf16 %v299, %v299
    %v316 = vpack.c.bf16 %v300, %v300
    %v317 = vpack.c.bf16 %v301, %v301
    %v318 = vpack.c.bf16 %v302, %v302
    %v319 = vpack.c.bf16 %v303, %v303
    %v320 = vpack.c.bf16 %v304, %v304
    %v321 = vpack.c.bf16 %v305, %v305
    %322 = vst [vmem:[%s3] sm:$0xf] %v306
    %323 = vst [vmem:[%s3 + $0x4] sm:$0xf] %v307
    %324 = vst [vmem:[%s3 + $0x8] sm:$0xf] %v308
    %325 = vst [vmem:[%s3 + $0xc] sm:$0xf] %v309
    %326 = vst [vmem:[%s3 + $0x10] sm:$0xf] %v310
    %327 = vst [vmem:[%s3 + $0x14] sm:$0xf] %v311
    %328 = vst [vmem:[%s3 + $0x18] sm:$0xf] %v312
    %329 = vst [vmem:[%s3 + $0x1c] sm:$0xf] %v313
    %330 = vst [vmem:[%s3 + $0x20] sm:$0xf] %v314
    %331 = vst [vmem:[%s3 + $0x24] sm:$0xf] %v315
    %332 = vst [vmem:[%s3 + $0x28] sm:$0xf] %v316
    %333 = vst [vmem:[%s3 + $0x2c] sm:$0xf] %v317
    %334 = vst [vmem:[%s3 + $0x30] sm:$0xf] %v318
    %335 = vst [vmem:[%s3 + $0x34] sm:$0xf] %v319
    %336 = vst [vmem:[%s3 + $0x38] sm:$0xf] %v320
    %337 = vst [vmem:[%s3 + $0x3c] sm:$0xf] %v321
  $region21: #{unet_block_forward.32} parent=0 // pred_fallthru
    _
  // Predicated region
  $region22: #{unet_block_forward.32} parent=0 // pred_check
    _
  $region23: #{unet_block_forward.32} parent=0 // pred_check_branch
    %339 = sbr.rel (0) target = $region25
  $region24: #{unet_block_forward.32} parent=0 // pred_region
    _
  $region25: #{unet_block_forward.32} parent=0 // pred_fallthru
    _
  // Predicated region
  $region26: #{unet_block_forward.32} parent=0 // pred_check
    _
  $region27: #{unet_block_forward.32} parent=0 // pred_check_branch
    %341 = sbr.rel (0) target = $region29
  $region28: #{unet_block_forward.32} parent=0 // pred_region
    _
  $region29: #{unet_block_forward.32} parent=0 // pred_fallthru
    _

</llo_original>
